<compile_context>
chip_gen: v7x
topology: tpu7x:2x2x1
jax: 0.10.0
libtpu: 0.0.40
codegen_flags: <defaults>
</compile_context>

<pallas_src>
import functools

import jax
import jax.numpy as jnp
from jax import lax
from jax.experimental import pallas as pl
from jax.experimental.pallas import tpu as pltpu

EXPANSION = 4
BN_EPS = 1e-5
COMPUTE_DTYPE = jnp.bfloat16        # MXU operand dtype; accumulation is f32
_DEFAULT_VMEM_LIMIT = 48 * 1024 * 1024


@functools.lru_cache(maxsize=None)
def _vmem_limit():
    """Scoped VMEM limit derived from the actual chip (v7x has only 64 MiB)."""
    try:
        cap = getattr(pltpu.get_tpu_info(), "vmem_capacity_bytes", None)
        if cap:
            return int(min(int(cap) * 3 // 4, 100 * 1024 * 1024))
    except Exception:
        pass
    return _DEFAULT_VMEM_LIMIT


# ----------------------------- Pallas kernels ------------------------------ #

def _mm_kernel(x_ref, w_ref, b_ref, o_ref, *, relu):
    # (tm, K) @ (K, tn) + bias [+ ReLU]; x cast to bf16 in-kernel (VPU slot),
    # BN scale pre-folded into the weight columns.
    x = x_ref[...].astype(w_ref.dtype)
    out = jnp.dot(x, w_ref[...], preferred_element_type=jnp.float32) + b_ref[...]
    if relu:
        out = jnp.maximum(out, 0.0)
    o_ref[...] = out.astype(o_ref.dtype)


def _mm_res_kernel(x_ref, w_ref, b_ref, r_ref, o_ref, *, relu):
    # conv3 + bn3 + identity residual (added in f32) + ReLU, fully fused.
    x = x_ref[...].astype(w_ref.dtype)
    acc = jnp.dot(x, w_ref[...], preferred_element_type=jnp.float32)
    out = acc + b_ref[...] + r_ref[...].astype(jnp.float32)
    if relu:
        out = jnp.maximum(out, 0.0)
    o_ref[...] = out.astype(o_ref.dtype)


def _mm_ds_kernel(x_ref, w_ref, b_ref, xd_ref, wd_ref, o_ref, *, relu):
    # conv3 + bn3 + (downsample 1x1 conv + bnd) + add + ReLU, fully fused.
    # xd arrives as f32 and is cast to bf16 here (no wrapper-side cast pass).
    x = x_ref[...].astype(w_ref.dtype)
    xd = xd_ref[...].astype(wd_ref.dtype)
    acc = jnp.dot(x, w_ref[...], preferred_element_type=jnp.float32)
    acc = acc + jnp.dot(xd, wd_ref[...], preferred_element_type=jnp.float32)
    out = acc + b_ref[...]
    if relu:
        out = jnp.maximum(out, 0.0)
    o_ref[...] = out.astype(o_ref.dtype)


def _conv3x3_kernel(x_ref, w_ref, b_ref, o_ref, patch_ref, *, stride, th, Wo, C):
    """3x3/stride conv + bn2 + ReLU for one output row-tile of one image.

    x_ref:     (s*s, Hh, Wh, C) parity-decomposed (s>1) or zero-padded (s==1)
               image, fully VMEM-resident (block index constant across row tiles
               so the copy is only issued once per image).
    w_ref:     (9*C, Cout) with BN scale folded in; b_ref: (1, Cout) f32.
    o_ref:     (1, th, Wo, Cout).
    patch_ref: (th, Wo, 9*C) bf16 VMEM scratch -- the im2col patch never touches
               HBM and the accumulation stays inside a single MXU matmul.
    """
    ho0 = pl.program_id(1) * th
    for kh in range(3):
        for kw in range(3):
            p = (kh % stride) * stride + (kw % stride)
            rows = x_ref[p, pl.ds(ho0 + kh // stride, th),
                         pl.ds(kw // stride, Wo), :]            # (th, Wo, C)
            t = kh * 3 + kw
            patch_ref[:, :, t * C:(t + 1) * C] = rows
    Cout = w_ref.shape[-1]
    patch = patch_ref[...].reshape(th * Wo, 9 * C)
    acc = jnp.dot(patch, w_ref[...], preferred_element_type=jnp.float32)
    out = jnp.maximum(acc + b_ref[...], 0.0)
    o_ref[0] = out.reshape(th, Wo, Cout).astype(o_ref.dtype)


# ------------------------------- wrappers ----------------------------------- #

def _pick_m_tile(m, max_tile=512, min_steps=4):
    # Largest tile (<=512, multiple of 8) dividing M that still gives >=4 grid
    # steps (pipelining overlap + work for both v7x TensorCores).
    fallback = None
    for t in (512, 256, 128, 64, 32, 16, 8):
        if t > max_tile or m % t:
            continue
        if fallback is None:
            fallback = t
        if m // t >= min_steps:
            return t
    return fallback if fallback is not None else m


def _pick_n_tile(c):
    if c <= 512:
        return c            # full-Cout block; bf16 weights stay VMEM-resident
    for t in (512, 256, 128):
        if c % t == 0:
            return t
    return c


def _pick_row_tile(ho, wo, n, min_steps=4, max_patch_rows=2048):
    # Largest divisor of Ho whose im2col patch stays small and which still
    # yields >= min_steps grid steps in total.
    divisors = [d for d in range(ho, 0, -1) if ho % d == 0]
    feasible = [d for d in divisors if d * wo <= max_patch_rows] or [1]
    for d in feasible:                       # descending
        if n * (ho // d) >= min_steps:
            return d
    return feasible[-1]


def fused_matmul(x2d, w, bias, *, relu, residual=None, ds=None,
                 out_dtype=COMPUTE_DTYPE):
    """out = act(cast(x2d) @ w + bias [+ residual_f32] [+ cast(xd) @ wd])."""
    M, K = x2d.shape
    Cout = w.shape[1]
    tm = _pick_m_tile(M)
    tn = _pick_n_tile(Cout)

    in_specs = [
        pl.BlockSpec((tm, K), lambda i, j: (i, 0)),
        pl.BlockSpec((K, tn), lambda i, j: (0, j)),
        pl.BlockSpec((1, tn), lambda i, j: (0, j)),
    ]
    args = [x2d, w, bias]
    if residual is not None:
        kernel = functools.partial(_mm_res_kernel, relu=relu)
        in_specs.append(pl.BlockSpec((tm, tn), lambda i, j: (i, j)))
        args.append(residual)
    elif ds is not None:
        xd2d, wd = ds
        Kd = xd2d.shape[1]
        kernel = functools.partial(_mm_ds_kernel, relu=relu)
        in_specs.append(pl.BlockSpec((tm, Kd), lambda i, j: (i, 0)))
        in_specs.append(pl.BlockSpec((Kd, tn), lambda i, j: (0, j)))
        args += [xd2d, wd]
    else:
        kernel = functools.partial(_mm_kernel, relu=relu)

    # TODO(synk): for Cout < 128 (v5e) a lane-dense (M//g, g*Cout) output packing
    #             would turn the masked vst.msk stores into full-lane stores.
    return pl.pallas_call(
        kernel,
        out_shape=jax.ShapeDtypeStruct((M, Cout), out_dtype),
        grid_spec=pltpu.PrefetchScalarGridSpec(
            num_scalar_prefetch=0,
            grid=(M // tm, Cout // tn),
            in_specs=in_specs,
            out_specs=pl.BlockSpec((tm, tn), lambda i, j: (i, j)),
        ),
        compiler_params=pltpu.CompilerParams(
            dimension_semantics=("parallel", "parallel"),
            vmem_limit_bytes=_vmem_limit(),
        ),
    )(*args)


def _space_to_batch_3x3(x_nhwc, stride):
    """Zero-pad (pad=1) + parity-decompose for a 3x3/stride>1 conv.

    Returns xs of shape (N*s*s, Hh, Wh, C) such that tap (kh, kw) at output
    (ho, wo) of image n reads
        xs[n*s*s + (kh % s)*s + (kw % s), ho + kh//s, wo + kw//s, :].
    1x data movement (vs 9x for im2col).
    """
    N, H, W, C = x_nhwc.shape
    s = stride
    Ho = (H - 1) // s + 1
    Wo = (W - 1) // s + 1
    Hh = max(-(-(H + 2) // s), 2 // s + Ho)
    Wh = max(-(-(W + 2) // s), 2 // s + Wo)
    xp = jnp.pad(x_nhwc,
                 ((0, 0), (1, Hh * s - H - 1), (1, Wh * s - W - 1), (0, 0)))
    xs = xp.reshape(N, Hh, s, Wh, s, C).transpose(0, 2, 4, 1, 3, 5)
    return xs.reshape(N * s * s, Hh, Wh, C), Ho, Wo, Hh, Wh


def conv3x3_bn_relu(x_nhwc, w2_mat, bias, stride):
    N, H, W, C = x_nhwc.shape
    Cout = w2_mat.shape[-1]
    if stride == 1:
        # Common (identity) case: plain 1-pixel zero pad, no space-to-batch
        # reshape/transpose round trip.
        # TODO(synk): conv1 could write straight into this padded buffer
        #             (offset out_specs + input_output_aliases) to skip the pad.
        Ho, Wo = H, W
        Hh, Wh = H + 2, W + 2
        xs = jnp.pad(x_nhwc, ((0, 0), (1, 1), (1, 1), (0, 0)))
    else:
        xs, Ho, Wo, Hh, Wh = _space_to_batch_3x3(x_nhwc, stride)
    nplanes = stride * stride
    th = _pick_row_tile(Ho, Wo, N)
    kernel = functools.partial(_conv3x3_kernel, stride=stride, th=th, Wo=Wo, C=C)
    out = pl.pallas_call(
        kernel,
        out_shape=jax.ShapeDtypeStruct((N, Ho, Wo, Cout), COMPUTE_DTYPE),
        grid_spec=pltpu.PrefetchScalarGridSpec(
            num_scalar_prefetch=0,
            grid=(N, Ho // th),
            in_specs=[
                pl.BlockSpec((nplanes, Hh, Wh, C), lambda n, rt: (n, 0, 0, 0)),
                pl.BlockSpec((9 * C, Cout), lambda n, rt: (0, 0)),
                pl.BlockSpec((1, Cout), lambda n, rt: (0, 0)),
            ],
            out_specs=pl.BlockSpec((1, th, Wo, Cout), lambda n, rt: (n, rt, 0, 0)),
            scratch_shapes=[pltpu.VMEM((th, Wo, 9 * C), COMPUTE_DTYPE)],
        ),
        compiler_params=pltpu.CompilerParams(
            dimension_semantics=("parallel", "parallel"),
            vmem_limit_bytes=_vmem_limit(),
        ),
    )(xs, w2_mat, bias)
    return out, Ho, Wo


# ------------------------- parameter preparation ---------------------------- #

def fold_bn(gamma, beta, mean, var, eps=BN_EPS):
    scale = gamma * lax.rsqrt(var + eps)            # (C,)
    bias = (beta - mean * scale)[None, :]           # (1, C), f32
    return scale, bias


def w_oihw_to_mat(w_oihw):
    """PyTorch (Cout, Cin, 1, 1) -> (Cin, Cout)."""
    cout, cin, kh, kw = w_oihw.shape
    return jnp.transpose(w_oihw, (2, 3, 1, 0)).reshape(kh * kw * cin, cout)


def prepare_params(params):
    """Pre-fold BN into the weights (once, outside the hot path), cast to bf16."""
    s1, b1 = fold_bn(*params["bn1"])
    s2, b2 = fold_bn(*params["bn2"])
    s3, b3 = fold_bn(*params["bn3"])
    cout2, cin2, _, _ = params["w2"].shape
    prep = {
        "w1": (w_oihw_to_mat(params["w1"]) * s1).astype(COMPUTE_DTYPE),
        "b1": b1,
        # (Cout,Cin,3,3) -> (3,3,Cin,Cout) -> (9*Cin, Cout): row (kh*3+kw)*Cin+c
        # matches the in-kernel im2col column layout.
        "w2": (jnp.transpose(params["w2"], (2, 3, 1, 0)) * s2
               ).reshape(9 * cin2, cout2).astype(COMPUTE_DTYPE),
        "b2": b2,
        "w3": (w_oihw_to_mat(params["w3"]) * s3).astype(COMPUTE_DTYPE),
        "b3": b3,
    }
    if "wd" in params:
        sd, bd = fold_bn(*params["bnd"])
        prep["wd"] = (w_oihw_to_mat(params["wd"]) * sd).astype(COMPUTE_DTYPE)
        prep["b3"] = b3 + bd   # combined bias for the fused conv3 + downsample
    return prep


# ------------------------------- forward ------------------------------------ #

def bottleneck_forward(x_nhwc, prep, stride):
    N, H, W, Cin = x_nhwc.shape
    planes = prep["w1"].shape[1]
    out_c = planes * EXPANSION
    has_ds = "wd" in prep

    # conv1 (1x1) + bn1 + relu  (x DMA'd as f32, cast to bf16 in-kernel)
    out = fused_matmul(x_nhwc.reshape(N * H * W, Cin), prep["w1"], prep["b1"],
                       relu=True)
    out = out.reshape(N, H, W, planes)

    # conv2 (3x3, stride, pad=1) + bn2 + relu  (in-kernel im2col, one matmul)
    out, Ho, Wo = conv3x3_bn_relu(out, prep["w2"], prep["b2"], stride)
    out2d = out.reshape(N * Ho * Wo, planes)

    # conv3 (1x1) + bn3 + (downsample | identity, f32) + relu, one fused kernel
    if has_ds:
        # TODO(synk): the stride-2 subsample is still a wrapper-side XLA slice;
        #             a strided in-kernel gather would remove this HBM pass.
        xd = x_nhwc[:, ::stride, ::stride, :].reshape(N * Ho * Wo, Cin)  # f32
        y = fused_matmul(out2d, prep["w3"], prep["b3"], relu=True,
                         ds=(xd, prep["wd"]))
    else:
        r = x_nhwc.reshape(N * Ho * Wo, Cin)                              # f32
        y = fused_matmul(out2d, prep["w3"], prep["b3"], relu=True, residual=r)
    return y.reshape(N, Ho, Wo, out_c)


# --------------------------- pure-JAX reference ------------------------------ #

def _ref_conv(x_nhwc, w_oihw, stride, padding):
    w_hwio = jnp.transpose(w_oihw, (2, 3, 1, 0))
    return lax.conv_general_dilated(
        x_nhwc, w_hwio, (stride, stride), padding,
        dimension_numbers=("NHWC", "HWIO", "NHWC"))


def _ref_bn(x, bn):
    gamma, beta, mean, var = bn
    return (x - mean) / jnp.sqrt(var + BN_EPS) * gamma + beta


def ref_bottleneck(x_nhwc, params, stride):
    planes = params["w1"].shape[0]
    Cin = x_nhwc.shape[-1]
    out = jax.nn.relu(_ref_bn(_ref_conv(x_nhwc, params["w1"], 1, "VALID"),
                              params["bn1"]))
    out = jax.nn.relu(_ref_bn(_ref_conv(out, params["w2"], stride,
                                        ((1, 1), (1, 1))), params["bn2"]))
    out = _ref_bn(_ref_conv(out, params["w3"], 1, "VALID"), params["bn3"])
    if stride != 1 or Cin != planes * EXPANSION:
        identity = _ref_bn(_ref_conv(x_nhwc, params["wd"], stride, "VALID"),
                           params["bnd"])
    else:
        identity = x_nhwc
    return jax.nn.relu(out + identity)


# --------------------------------- main -------------------------------------- #

def make_params(key, inplanes, planes, stride):
    out_c = planes * EXPANSION
    keys = jax.random.split(key, 20)

    def bn(k, c):
        k1, k2, k3, k4 = jax.random.split(k, 4)
        gamma = jax.random.uniform(k1, (c,), jnp.float32, 0.5, 1.5)
        beta = 0.1 * jax.random.normal(k2, (c,), jnp.float32)
        mean = 0.1 * jax.random.normal(k3, (c,), jnp.float32)
        var = jax.random.uniform(k4, (c,), jnp.float32, 0.5, 1.5)
        return (gamma, beta, mean, var)

    params = {
        "w1": 0.1 * jax.random.normal(keys[0], (planes, inplanes, 1, 1), jnp.float32),
        "bn1": bn(keys[1], planes),
        "w2": 0.1 * jax.random.normal(keys[2], (planes, planes, 3, 3), jnp.float32),
        "bn2": bn(keys[3], planes),
        "w3": 0.1 * jax.random.normal(keys[4], (out_c, planes, 1, 1), jnp.float32),
        "bn3": bn(keys[5], out_c),
    }
    if stride != 1 or inplanes != out_c:
        params["wd"] = 0.1 * jax.random.normal(keys[6], (out_c, inplanes, 1, 1),
                                               jnp.float32)
        params["bnd"] = bn(keys[7], out_c)
    return params


def _run_case(key, N, inplanes, planes, H, W, stride):
    kx, kp = jax.random.split(key)
    x_nchw = jax.random.normal(kx, (N, inplanes, H, W), jnp.float32)  # PyTorch layout
    x_nhwc = jnp.transpose(x_nchw, (0, 2, 3, 1))                      # kernel layout

    params = make_params(kp, inplanes, planes, stride)
    prep = prepare_params(params)

    fwd = jax.jit(functools.partial(bottleneck_forward, stride=stride))
    out = jax.block_until_ready(fwd(x_nhwc, prep))
    ref = jax.block_until_ready(ref_bottleneck(x_nhwc, params, stride))

    Ho = (H - 1) // stride + 1
    Wo = (W - 1) // stride + 1
    assert out.shape == (N, Ho, Wo, planes * EXPANSION), out.shape
    out_f32 = out.astype(jnp.float32)
    max_err = float(jnp.max(jnp.abs(out_f32 - ref)))
    # bf16 operands / output (f32 accumulation) vs the f32 reference.
    assert jnp.allclose(out_f32, ref, rtol=5e-2, atol=5e-2), max_err
    return max_err


if __name__ == "__main__":
    key = jax.random.PRNGKey(0)
    k1, k2 = jax.random.split(key)
    # downsample path (stride=2, projection shortcut)
    _run_case(k1, N=2, inplanes=8, planes=4, H=16, W=16, stride=2)
    # identity path (stride=1, inplanes == planes * expansion)
    _run_case(k2, N=2, inplanes=16, planes=4, H=16, W=16, stride=1)
    print("KERNEL_OK")
</pallas_src>

<mosaic_0001>
module attributes {stable_mosaic.version = 11 : i64} {
  func.func @_mm_kernel(%arg0: i32, %arg1: i32, %arg2: memref<128x8xf32, #tpu.memory_space<vmem>>, %arg3: memref<8x4xbf16, #tpu.memory_space<vmem>>, %arg4: memref<1x4xf32, #tpu.memory_space<vmem>>, %arg5: memref<128x4xbf16, #tpu.memory_space<vmem>>) attributes {dimension_semantics = [#tpu.dimension_semantics<parallel>, #tpu.dimension_semantics<parallel>], iteration_bounds = array<i64: 4, 1>, scalar_prefetch = 0 : i64, scratch_operands = 0 : i64, tpu.core_type = #tpu.core_type<tc>, window_params = [{transform_indices = @transform_0, window_bounds = array<i64: 128, 8>}, {transform_indices = @transform_1, window_bounds = array<i64: 8, 4>}, {transform_indices = @transform_2, window_bounds = array<i64: 1, 4>}, {transform_indices = @transform_3, window_bounds = array<i64: 128, 4>}]} {
    %c0 = arith.constant 0 : index
    %c0_0 = arith.constant 0 : index
    %0 = vector.load %arg2[%c0, %c0_0] : memref<128x8xf32, #tpu.memory_space<vmem>>, vector<128x8xf32>
    %1 = arith.truncf %0 : vector<128x8xf32> to vector<128x8xbf16>
    %c0_1 = arith.constant 0 : index
    %c0_2 = arith.constant 0 : index
    %2 = vector.load %arg3[%c0_1, %c0_2] : memref<8x4xbf16, #tpu.memory_space<vmem>>, vector<8x4xbf16>
    %cst = arith.constant dense<0.000000e+00> : vector<128x4xf32>
    %3 = tpu.matmul %1, %2, %cst {dimension_numbers = #tpu.dot_dimension_numbers<[1], [0], [0], [1], [0, 0, 1, 1], [], []>} : vector<128x8xbf16>, vector<8x4xbf16>, vector<128x4xf32> -> vector<128x4xf32>
    %c0_3 = arith.constant 0 : index
    %c0_4 = arith.constant 0 : index
    %4 = vector.load %arg4[%c0_3, %c0_4] : memref<1x4xf32, #tpu.memory_space<vmem>>, vector<1x4xf32>
    %5 = vector.broadcast %4 : vector<1x4xf32> to vector<128x4xf32>
    %6 = arith.addf %3, %5 : vector<128x4xf32>
    %cst_5 = arith.constant 0.000000e+00 : f32
    %7 = vector.broadcast %cst_5 : f32 to vector<128x4xf32>
    %8 = arith.maximumf %6, %7 : vector<128x4xf32>
    %9 = arith.truncf %8 : vector<128x4xf32> to vector<128x4xbf16>
    %c0_6 = arith.constant 0 : index
    %c0_7 = arith.constant 0 : index
    %10 = vector.load %arg5[%c0_6, %c0_7] : memref<128x4xbf16, #tpu.memory_space<vmem>>, vector<128x4xbf16>
    tpu.vector_store %arg5[%c0_6, %c0_7], %9 {strides = array<i32>} : memref<128x4xbf16, #tpu.memory_space<vmem>>, vector<128x4xbf16>,
    return
  }
  func.func @transform_0(%arg0: i32, %arg1: i32) -> (i32, i32) {
    %c0_i32 = arith.constant 0 : i32
    %c0_i32_0 = arith.constant 0 : i32
    return %arg0, %c0_i32 : i32, i32
  }
  func.func @transform_1(%arg0: i32, %arg1: i32) -> (i32, i32) {
    %c0_i32 = arith.constant 0 : i32
    %c0_i32_0 = arith.constant 0 : i32
    return %c0_i32, %arg1 : i32, i32
  }
  func.func @transform_2(%arg0: i32, %arg1: i32) -> (i32, i32) {
    %c0_i32 = arith.constant 0 : i32
    %c0_i32_0 = arith.constant 0 : i32
    return %c0_i32, %arg1 : i32, i32
  }
  func.func @transform_3(%arg0: i32, %arg1: i32) -> (i32, i32) {
    %c0_i32 = arith.constant 0 : i32
    return %arg0, %arg1 : i32, i32
  }
}

module attributes {stable_mosaic.version = 11 : i64} {
  func.func @_conv3x3_kernel(%arg0: i32, %arg1: i32, %arg2: memref<4x9x9x4xbf16, #tpu.memory_space<vmem>>, %arg3: memref<36x4xbf16, #tpu.memory_space<vmem>>, %arg4: memref<1x4xf32, #tpu.memory_space<vmem>>, %arg5: memref<1x4x8x4xbf16, #tpu.memory_space<vmem>>, %arg6: memref<4x8x36xbf16, #tpu.memory_space<vmem>>) attributes {dimension_semantics = [#tpu.dimension_semantics<parallel>, #tpu.dimension_semantics<parallel>], iteration_bounds = array<i64: 2, 2>, scalar_prefetch = 0 : i64, scratch_operands = 1 : i64, tpu.core_type = #tpu.core_type<tc>, window_params = [{transform_indices = @transform_0, window_bounds = array<i64: 4, 9, 9, 4>}, {pipeline_mode = #tpu.pipeline_mode<synchronous>, transform_indices = @transform_1, window_bounds = array<i64: 36, 4>}, {pipeline_mode = #tpu.pipeline_mode<synchronous>, transform_indices = @transform_2, window_bounds = array<i64: 1, 4>}, {transform_indices = @transform_3, window_bounds = array<i64: 1, 4, 8, 4>}]} {
    %c4_i32 = arith.constant 4 : i32
    %0 = arith.muli %arg1, %c4_i32 : i32
    %c0_i32 = arith.constant 0 : i32
    %1 = arith.addi %0, %c0_i32 : i32
    %c0 = arith.constant 0 : index
    %2 = arith.index_cast %1 : i32 to index
    %c0_0 = arith.constant 0 : index
    %c0_1 = arith.constant 0 : index
    %3 = vector.load %arg2[%c0, %2, %c0_0, %c0_1] : memref<4x9x9x4xbf16, #tpu.memory_space<vmem>>, vector<1x4x8x4xbf16>
    %4 = vector.shape_cast %3 : vector<1x4x8x4xbf16> to vector<4x8x4xbf16>
    %c0_2 = arith.constant 0 : index
    %c0_3 = arith.constant 0 : index
    %c0_4 = arith.constant 0 : index
    %5 = vector.load %arg6[%c0_2, %c0_3, %c0_4] : memref<4x8x36xbf16, #tpu.memory_space<vmem>>, vector<4x8x4xbf16>
    tpu.vector_store %arg6[%c0_2, %c0_3, %c0_4], %4 {strides = array<i32>} : memref<4x8x36xbf16, #tpu.memory_space<vmem>>, vector<4x8x4xbf16>,
    %c0_i32_5 = arith.constant 0 : i32
    %6 = arith.addi %0, %c0_i32_5 : i32
    %c1 = arith.constant 1 : index
    %7 = arith.index_cast %6 : i32 to index
    %c0_6 = arith.constant 0 : index
    %c0_7 = arith.constant 0 : index
    %8 = vector.load %arg2[%c1, %7, %c0_6, %c0_7] : memref<4x9x9x4xbf16, #tpu.memory_space<vmem>>, vector<1x4x8x4xbf16>
    %9 = vector.shape_cast %8 : vector<1x4x8x4xbf16> to vector<4x8x4xbf16>
    %c0_8 = arith.constant 0 : index
    %c0_9 = arith.constant 0 : index
    %c4 = arith.constant 4 : index
    %10 = vector.load %arg6[%c0_8, %c0_9, %c4] : memref<4x8x36xbf16, #tpu.memory_space<vmem>>, vector<4x8x4xbf16>
    tpu.vector_store %arg6[%c0_8, %c0_9, %c4], %9 {strides = array<i32>} : memref<4x8x36xbf16, #tpu.memory_space<vmem>>, vector<4x8x4xbf16>,
    %c0_i32_10 = arith.constant 0 : i32
    %11 = arith.addi %0, %c0_i32_10 : i32
    %c0_11 = arith.constant 0 : index
    %12 = arith.index_cast %11 : i32 to index
    %c1_12 = arith.constant 1 : index
    %c0_13 = arith.constant 0 : index
    %13 = vector.load %arg2[%c0_11, %12, %c1_12, %c0_13] : memref<4x9x9x4xbf16, #tpu.memory_space<vmem>>, vector<1x4x8x4xbf16>
    %14 = vector.shape_cast %13 : vector<1x4x8x4xbf16> to vector<4x8x4xbf16>
    %c0_14 = arith.constant 0 : index
    %c0_15 = arith.constant 0 : index
    %c8 = arith.constant 8 : index
    %15 = vector.load %arg6[%c0_14, %c0_15, %c8] : memref<4x8x36xbf16, #tpu.memory_space<vmem>>, vector<4x8x4xbf16>
    tpu.vector_store %arg6[%c0_14, %c0_15, %c8], %14 {strides = array<i32>} : memref<4x8x36xbf16, #tpu.memory_space<vmem>>, vector<4x8x4xbf16>,
    %c0_i32_16 = arith.constant 0 : i32
    %16 = arith.addi %0, %c0_i32_16 : i32
    %c2 = arith.constant 2 : index
    %17 = arith.index_cast %16 : i32 to index
    %c0_17 = arith.constant 0 : index
    %c0_18 = arith.constant 0 : index
    %18 = vector.load %arg2[%c2, %17, %c0_17, %c0_18] : memref<4x9x9x4xbf16, #tpu.memory_space<vmem>>, vector<1x4x8x4xbf16>
    %19 = vector.shape_cast %18 : vector<1x4x8x4xbf16> to vector<4x8x4xbf16>
    %c0_19 = arith.constant 0 : index
    %c0_20 = arith.constant 0 : index
    %c12 = arith.constant 12 : index
    %20 = vector.load %arg6[%c0_19, %c0_20, %c12] : memref<4x8x36xbf16, #tpu.memory_space<vmem>>, vector<4x8x4xbf16>
    tpu.vector_store %arg6[%c0_19, %c0_20, %c12], %19 {strides = array<i32>} : memref<4x8x36xbf16, #tpu.memory_space<vmem>>, vector<4x8x4xbf16>,
    %c0_i32_21 = arith.constant 0 : i32
    %21 = arith.addi %0, %c0_i32_21 : i32
    %c3 = arith.constant 3 : index
    %22 = arith.index_cast %21 : i32 to index
    %c0_22 = arith.constant 0 : index
    %c0_23 = arith.constant 0 : index
    %23 = vector.load %arg2[%c3, %22, %c0_22, %c0_23] : memref<4x9x9x4xbf16, #tpu.memory_space<vmem>>, vector<1x4x8x4xbf16>
    %24 = vector.shape_cast %23 : vector<1x4x8x4xbf16> to vector<4x8x4xbf16>
    %c0_24 = arith.constant 0 : index
    %c0_25 = arith.constant 0 : index
    %c16 = arith.constant 16 : index
    %25 = vector.load %arg6[%c0_24, %c0_25, %c16] : memref<4x8x36xbf16, #tpu.memory_space<vmem>>, vector<4x8x4xbf16>
    tpu.vector_store %arg6[%c0_24, %c0_25, %c16], %24 {strides = array<i32>} : memref<4x8x36xbf16, #tpu.memory_space<vmem>>, vector<4x8x4xbf16>,
    %c0_i32_26 = arith.constant 0 : i32
    %26 = arith.addi %0, %c0_i32_26 : i32
    %c2_27 = arith.constant 2 : index
    %27 = arith.index_cast %26 : i32 to index
    %c1_28 = arith.constant 1 : index
    %c0_29 = arith.constant 0 : index
    %28 = vector.load %arg2[%c2_27, %27, %c1_28, %c0_29] : memref<4x9x9x4xbf16, #tpu.memory_space<vmem>>, vector<1x4x8x4xbf16>
    %29 = vector.shape_cast %28 : vector<1x4x8x4xbf16> to vector<4x8x4xbf16>
    %c0_30 = arith.constant 0 : index
    %c0_31 = arith.constant 0 : index
    %c20 = arith.constant 20 : index
    %30 = vector.load %arg6[%c0_30, %c0_31, %c20] : memref<4x8x36xbf16, #tpu.memory_space<vmem>>, vector<4x8x4xbf16>
    tpu.vector_store %arg6[%c0_30, %c0_31, %c20], %29 {strides = array<i32>} : memref<4x8x36xbf16, #tpu.memory_space<vmem>>, vector<4x8x4xbf16>,
    %c1_i32 = arith.constant 1 : i32
    %31 = arith.addi %0, %c1_i32 : i32
    %c0_32 = arith.constant 0 : index
    %32 = arith.index_cast %31 : i32 to index
    %c0_33 = arith.constant 0 : index
    %c0_34 = arith.constant 0 : index
    %33 = vector.load %arg2[%c0_32, %32, %c0_33, %c0_34] : memref<4x9x9x4xbf16, #tpu.memory_space<vmem>>, vector<1x4x8x4xbf16>
    %34 = vector.shape_cast %33 : vector<1x4x8x4xbf16> to vector<4x8x4xbf16>
    %c0_35 = arith.constant 0 : index
    %c0_36 = arith.constant 0 : index
    %c24 = arith.constant 24 : index
    %35 = vector.load %arg6[%c0_35, %c0_36, %c24] : memref<4x8x36xbf16, #tpu.memory_space<vmem>>, vector<4x8x4xbf16>
    tpu.vector_store %arg6[%c0_35, %c0_36, %c24], %34 {strides = array<i32>} : memref<4x8x36xbf16, #tpu.memory_space<vmem>>, vector<4x8x4xbf16>,
    %c1_i32_37 = arith.constant 1 : i32
    %36 = arith.addi %0, %c1_i32_37 : i32
    %c1_38 = arith.constant 1 : index
    %37 = arith.index_cast %36 : i32 to index
    %c0_39 = arith.constant 0 : index
    %c0_40 = arith.constant 0 : index
    %38 = vector.load %arg2[%c1_38, %37, %c0_39, %c0_40] : memref<4x9x9x4xbf16, #tpu.memory_space<vmem>>, vector<1x4x8x4xbf16>
    %39 = vector.shape_cast %38 : vector<1x4x8x4xbf16> to vector<4x8x4xbf16>
    %c0_41 = arith.constant 0 : index
    %c0_42 = arith.constant 0 : index
    %c28 = arith.constant 28 : index
    %40 = vector.load %arg6[%c0_41, %c0_42, %c28] : memref<4x8x36xbf16, #tpu.memory_space<vmem>>, vector<4x8x4xbf16>
    tpu.vector_store %arg6[%c0_41, %c0_42, %c28], %39 {strides = array<i32>} : memref<4x8x36xbf16, #tpu.memory_space<vmem>>, vector<4x8x4xbf16>,
    %c1_i32_43 = arith.constant 1 : i32
    %41 = arith.addi %0, %c1_i32_43 : i32
    %c0_44 = arith.constant 0 : index
    %42 = arith.index_cast %41 : i32 to index
    %c1_45 = arith.constant 1 : index
    %c0_46 = arith.constant 0 : index
    %43 = vector.load %arg2[%c0_44, %42, %c1_45, %c0_46] : memref<4x9x9x4xbf16, #tpu.memory_space<vmem>>, vector<1x4x8x4xbf16>
    %44 = vector.shape_cast %43 : vector<1x4x8x4xbf16> to vector<4x8x4xbf16>
    %c0_47 = arith.constant 0 : index
    %c0_48 = arith.constant 0 : index
    %c32 = arith.constant 32 : index
    %45 = vector.load %arg6[%c0_47, %c0_48, %c32] : memref<4x8x36xbf16, #tpu.memory_space<vmem>>, vector<4x8x4xbf16>
    tpu.vector_store %arg6[%c0_47, %c0_48, %c32], %44 {strides = array<i32>} : memref<4x8x36xbf16, #tpu.memory_space<vmem>>, vector<4x8x4xbf16>,
    %c0_49 = arith.constant 0 : index
    %c0_50 = arith.constant 0 : index
    %c0_51 = arith.constant 0 : index
    %46 = vector.load %arg6[%c0_49, %c0_50, %c0_51] : memref<4x8x36xbf16, #tpu.memory_space<vmem>>, vector<4x8x36xbf16>
    %47 = vector.shape_cast %46 : vector<4x8x36xbf16> to vector<32x36xbf16>
    %c0_52 = arith.constant 0 : index
    %c0_53 = arith.constant 0 : index
    %48 = vector.load %arg3[%c0_52, %c0_53] : memref<36x4xbf16, #tpu.memory_space<vmem>>, vector<36x4xbf16>
    %cst = arith.constant dense<0.000000e+00> : vector<32x4xf32>
    %49 = tpu.matmul %47, %48, %cst {dimension_numbers = #tpu.dot_dimension_numbers<[1], [0], [0], [1], [0, 0, 1, 1], [], []>} : vector<32x36xbf16>, vector<36x4xbf16>, vector<32x4xf32> -> vector<32x4xf32>
    %c0_54 = arith.constant 0 : index
    %c0_55 = arith.constant 0 : index
    %50 = vector.load %arg4[%c0_54, %c0_55] : memref<1x4xf32, #tpu.memory_space<vmem>>, vector<1x4xf32>
    %51 = vector.broadcast %50 : vector<1x4xf32> to vector<32x4xf32>
    %52 = arith.addf %49, %51 : vector<32x4xf32>
    %cst_56 = arith.constant 0.000000e+00 : f32
    %53 = vector.broadcast %cst_56 : f32 to vector<32x4xf32>
    %54 = arith.maximumf %52, %53 : vector<32x4xf32>
    %55 = vector.shape_cast %54 : vector<32x4xf32> to vector<4x8x4xf32>
    %56 = arith.truncf %55 : vector<4x8x4xf32> to vector<4x8x4xbf16>
    %c0_57 = arith.constant 0 : index
    %c0_58 = arith.constant 0 : index
    %c0_59 = arith.constant 0 : index
    %c0_60 = arith.constant 0 : index
    %57 = vector.load %arg5[%c0_57, %c0_58, %c0_59, %c0_60] : memref<1x4x8x4xbf16, #tpu.memory_space<vmem>>, vector<1x4x8x4xbf16>
    %58 = vector.shape_cast %57 : vector<1x4x8x4xbf16> to vector<4x8x4xbf16>
    %59 = vector.shape_cast %56 : vector<4x8x4xbf16> to vector<1x4x8x4xbf16>
    tpu.vector_store %arg5[%c0_57, %c0_58, %c0_59, %c0_60], %59 {strides = array<i32>} : memref<1x4x8x4xbf16, #tpu.memory_space<vmem>>, vector<1x4x8x4xbf16>,
    return
  }
  func.func @transform_0(%arg0: i32, %arg1: i32) -> (i32, i32, i32, i32) {
    %c0_i32 = arith.constant 0 : i32
    %c0_i32_0 = arith.constant 0 : i32
    %c0_i32_1 = arith.constant 0 : i32
    %c0_i32_2 = arith.constant 0 : i32
    return %arg0, %c0_i32, %c0_i32_0, %c0_i32_1 : i32, i32, i32, i32
  }
  func.func @transform_1(%arg0: i32, %arg1: i32) -> (i32, i32) {
    %c0_i32 = arith.constant 0 : i32
    %c0_i32_0 = arith.constant 0 : i32
    %c0_i32_1 = arith.constant 0 : i32
    return %c0_i32, %c0_i32_0 : i32, i32
  }
  func.func @transform_2(%arg0: i32, %arg1: i32) -> (i32, i32) {
    %c0_i32 = arith.constant 0 : i32
    %c0_i32_0 = arith.constant 0 : i32
    %c0_i32_1 = arith.constant 0 : i32
    return %c0_i32, %c0_i32_0 : i32, i32
  }
  func.func @transform_3(%arg0: i32, %arg1: i32) -> (i32, i32, i32, i32) {
    %c0_i32 = arith.constant 0 : i32
    %c0_i32_0 = arith.constant 0 : i32
    %c0_i32_1 = arith.constant 0 : i32
    return %arg0, %arg1, %c0_i32, %c0_i32_0 : i32, i32, i32, i32
  }
}

module attributes {stable_mosaic.version = 11 : i64} {
  func.func @_mm_ds_kernel(%arg0: i32, %arg1: i32, %arg2: memref<32x4xbf16, #tpu.memory_space<vmem>>, %arg3: memref<4x16xbf16, #tpu.memory_space<vmem>>, %arg4: memref<1x16xf32, #tpu.memory_space<vmem>>, %arg5: memref<32x8xf32, #tpu.memory_space<vmem>>, %arg6: memref<8x16xbf16, #tpu.memory_space<vmem>>, %arg7: memref<32x16xbf16, #tpu.memory_space<vmem>>) attributes {dimension_semantics = [#tpu.dimension_semantics<parallel>, #tpu.dimension_semantics<parallel>], iteration_bounds = array<i64: 4, 1>, scalar_prefetch = 0 : i64, scratch_operands = 0 : i64, tpu.core_type = #tpu.core_type<tc>, window_params = [{transform_indices = @transform_0, window_bounds = array<i64: 32, 4>}, {transform_indices = @transform_1, window_bounds = array<i64: 4, 16>}, {transform_indices = @transform_2, window_bounds = array<i64: 1, 16>}, {transform_indices = @transform_3, window_bounds = array<i64: 32, 8>}, {transform_indices = @transform_4, window_bounds = array<i64: 8, 16>}, {transform_indices = @transform_5, window_bounds = array<i64: 32, 16>}]} {
    %c0 = arith.constant 0 : index
    %c0_0 = arith.constant 0 : index
    %0 = vector.load %arg2[%c0, %c0_0] : memref<32x4xbf16, #tpu.memory_space<vmem>>, vector<32x4xbf16>
    %c0_1 = arith.constant 0 : index
    %c0_2 = arith.constant 0 : index
    %1 = vector.load %arg5[%c0_1, %c0_2] : memref<32x8xf32, #tpu.memory_space<vmem>>, vector<32x8xf32>
    %2 = arith.truncf %1 : vector<32x8xf32> to vector<32x8xbf16>
    %c0_3 = arith.constant 0 : index
    %c0_4 = arith.constant 0 : index
    %3 = vector.load %arg3[%c0_3, %c0_4] : memref<4x16xbf16, #tpu.memory_space<vmem>>, vector<4x16xbf16>
    %cst = arith.constant dense<0.000000e+00> : vector<32x16xf32>
    %4 = tpu.matmul %0, %3, %cst {dimension_numbers = #tpu.dot_dimension_numbers<[1], [0], [0], [1], [0, 0, 1, 1], [], []>} : vector<32x4xbf16>, vector<4x16xbf16>, vector<32x16xf32> -> vector<32x16xf32>
    %c0_5 = arith.constant 0 : index
    %c0_6 = arith.constant 0 : index
    %5 = vector.load %arg6[%c0_5, %c0_6] : memref<8x16xbf16, #tpu.memory_space<vmem>>, vector<8x16xbf16>
    %cst_7 = arith.constant dense<0.000000e+00> : vector<32x16xf32>
    %6 = tpu.matmul %2, %5, %cst_7 {dimension_numbers = #tpu.dot_dimension_numbers<[1], [0], [0], [1], [0, 0, 1, 1], [], []>} : vector<32x8xbf16>, vector<8x16xbf16>, vector<32x16xf32> -> vector<32x16xf32>
    %7 = arith.addf %4, %6 : vector<32x16xf32>
    %c0_8 = arith.constant 0 : index
    %c0_9 = arith.constant 0 : index
    %8 = vector.load %arg4[%c0_8, %c0_9] : memref<1x16xf32, #tpu.memory_space<vmem>>, vector<1x16xf32>
    %9 = vector.broadcast %8 : vector<1x16xf32> to vector<32x16xf32>
    %10 = arith.addf %7, %9 : vector<32x16xf32>
    %cst_10 = arith.constant 0.000000e+00 : f32
    %11 = vector.broadcast %cst_10 : f32 to vector<32x16xf32>
    %12 = arith.maximumf %10, %11 : vector<32x16xf32>
    %13 = arith.truncf %12 : vector<32x16xf32> to vector<32x16xbf16>
    %c0_11 = arith.constant 0 : index
    %c0_12 = arith.constant 0 : index
    %14 = vector.load %arg7[%c0_11, %c0_12] : memref<32x16xbf16, #tpu.memory_space<vmem>>, vector<32x16xbf16>
    tpu.vector_store %arg7[%c0_11, %c0_12], %13 {strides = array<i32>} : memref<32x16xbf16, #tpu.memory_space<vmem>>, vector<32x16xbf16>,
    return
  }
  func.func @transform_0(%arg0: i32, %arg1: i32) -> (i32, i32) {
    %c0_i32 = arith.constant 0 : i32
    %c0_i32_0 = arith.constant 0 : i32
    return %arg0, %c0_i32 : i32, i32
  }
  func.func @transform_1(%arg0: i32, %arg1: i32) -> (i32, i32) {
    %c0_i32 = arith.constant 0 : i32
    %c0_i32_0 = arith.constant 0 : i32
    return %c0_i32, %arg1 : i32, i32
  }
  func.func @transform_2(%arg0: i32, %arg1: i32) -> (i32, i32) {
    %c0_i32 = arith.constant 0 : i32
    %c0_i32_0 = arith.constant 0 : i32
    return %c0_i32, %arg1 : i32, i32
  }
  func.func @transform_3(%arg0: i32, %arg1: i32) -> (i32, i32) {
    %c0_i32 = arith.constant 0 : i32
    %c0_i32_0 = arith.constant 0 : i32
    return %arg0, %c0_i32 : i32, i32
  }
  func.func @transform_4(%arg0: i32, %arg1: i32) -> (i32, i32) {
    %c0_i32 = arith.constant 0 : i32
    %c0_i32_0 = arith.constant 0 : i32
    return %c0_i32, %arg1 : i32, i32
  }
  func.func @transform_5(%arg0: i32, %arg1: i32) -> (i32, i32) {
    %c0_i32 = arith.constant 0 : i32
    return %arg0, %arg1 : i32, i32
  }
}

</mosaic_0001>

<llo_original>
// kernel: bottleneck_forward.3
$region0: #{bottleneck_forward.3}
  #allocation0 [shape = 'u32[]', space=smem, size = 0x4, offset = 0x4, fixed_abs, tag = 'smem constant byte address 0x4 - core index']
  #allocation1 [shape = 'u32[144,128]{1,0:T(1,128)}', space=vmem, size = 0x12000, scoped, tag = 'internal scratch']
  %s0 = inlined_call_operand.vmem [shape: f32[512,8], index: 0, kind: input, shape index: {}]
  %s1 = inlined_call_operand.vmem [shape: bf16[8,4], index: 1, kind: input, shape index: {}]
  %s2 = inlined_call_operand.vmem [shape: f32[1,4], index: 2, kind: input, shape index: {}]
  %s3 = inlined_call_operand.vmem [shape: bf16[512,4], index: 3, kind: output, shape index: {}]
  %s4 = sld [smem:[#allocation0]]
  $region45: #{bottleneck_forward.3} parent=0
    _
  %s6 = ssub.s32 1, %s4
  %s7 = scalar_select 0, %s6, %s4
  loop: start=0, step=1, limit=6
  $region2: #{bottleneck_forward.3} parent=0 // loop_pre_header
    _
  $region3: #{bottleneck_forward.3} parent=0 // loop_header
    %s9 = sphi 0, %s13
    %p10 = scmp.ge.s32.totalorder %s9, 6
    %s16 = sphi 0, %s28
    %s17 = sphi 0, %s24
    %s18 = sphi 0, %s16
    %s19 = sphi 0, %s17
    %s20 = sphi 0, %s18
    %s21 = sphi 0, %s19
    %s31 = sphi 0, %s33
    %s34 = sphi 0, %s31
    %s35 = sphi 0, %s34
    %s51 = sphi 0, %s35
    %s57 = sphi 0, %s59
    %s60 = sphi 0, %s57
    %s61 = sphi 0, %s60
    %s77 = sphi 0, %s61
    %s83 = sphi 0, %s85
    %s86 = sphi 0, %s83
    %s87 = sphi 0, %s86
    %s103 = sphi 0, %s87
    %s111 = sphi 0, %s113
    %s114 = sphi 0, %s111
    %s115 = sphi 0, %s114
    %s131 = sphi 0, %s115
  $region4: #{bottleneck_forward.3} parent=0 // loop_header_branch
    %12 = sbr.rel (%p10) target = $region8
  $region5: #{bottleneck_forward.3} parent=0 // loop_body
    %s14 = ssub.s32 %s9, 1
    %s15 = ssub.s32 %s9, 2
    %s22 = sadd.s32 1, %s17
    %p23 = scmp.ge.s32.totalorder %s22, 1
    %s24 = scalar_select %p23, 0, %s22
    %s25 = sadd.s32 1, %s16
    %s26 = scalar_select %p23, %s25, %s16
    %p27 = scmp.ge.s32.totalorder %s26, 4
    %s28 = scalar_select %p27, 0, %s26
    %s29 = ssub.s32 %s16, %s28
    %p30 = scmp.eq.s32.totalorder %s29, 0
    %s32 = sadd.s32 %s31, 1
    %s33 = scalar_select %p30, %s31, %s32
    %p36 = pneg %p30
    %p37 = scmp.eq.s32.totalorder %s9, 3
    %p38 = por %p36, %p37
    %p39 = scmp.ne.s32.totalorder %s31, %s34
    %p40 = scmp.eq.s32.totalorder %s9, 0
    %p41 = por %p39, %p40
    %p42 = scmp.ne.s32.totalorder %s31, %s34
    %p43 = scmp.eq.s32.totalorder %s14, 3
    %p44 = por %p42, %p43
    %p45 = scmp.ne.s32.totalorder %s34, %s35
    %p46 = scmp.eq.s32.totalorder %s14, 0
    %p47 = por %p45, %p46
    %p48 = scmp.ne.s32.totalorder %s34, %s35
    %p49 = scmp.eq.s32.totalorder %s15, 3
    %p50 = por %p48, %p49
    %p52 = scmp.ne.s32.totalorder %s35, %s51
    %p53 = scmp.eq.s32.totalorder %s15, 0
    %p54 = por %p52, %p53
    %s55 = ssub.s32 %s17, %s24
    %p56 = scmp.eq.s32.totalorder %s55, 0
    %s58 = sadd.s32 %s57, 1
    %s59 = scalar_select %p56, %s57, %s58
    %p62 = pneg %p56
    %p63 = scmp.eq.s32.totalorder %s9, 3
    %p64 = por %p62, %p63
    %p65 = scmp.ne.s32.totalorder %s57, %s60
    %p66 = scmp.eq.s32.totalorder %s9, 0
    %p67 = por %p65, %p66
    %p68 = scmp.ne.s32.totalorder %s57, %s60
    %p69 = scmp.eq.s32.totalorder %s14, 3
    %p70 = por %p68, %p69
    %p71 = scmp.ne.s32.totalorder %s60, %s61
    %p72 = scmp.eq.s32.totalorder %s14, 0
    %p73 = por %p71, %p72
    %p74 = scmp.ne.s32.totalorder %s60, %s61
    %p75 = scmp.eq.s32.totalorder %s15, 3
    %p76 = por %p74, %p75
    %p78 = scmp.ne.s32.totalorder %s61, %s77
    %p79 = scmp.eq.s32.totalorder %s15, 0
    %p80 = por %p78, %p79
    %s81 = ssub.s32 %s17, %s24
    %p82 = scmp.eq.s32.totalorder %s81, 0
    %s84 = sadd.s32 %s83, 1
    %s85 = scalar_select %p82, %s83, %s84
    %p88 = pneg %p82
    %p89 = scmp.eq.s32.totalorder %s9, 3
    %p90 = por %p88, %p89
    %p91 = scmp.ne.s32.totalorder %s83, %s86
    %p92 = scmp.eq.s32.totalorder %s9, 0
    %p93 = por %p91, %p92
    %p94 = scmp.ne.s32.totalorder %s83, %s86
    %p95 = scmp.eq.s32.totalorder %s14, 3
    %p96 = por %p94, %p95
    %p97 = scmp.ne.s32.totalorder %s86, %s87
    %p98 = scmp.eq.s32.totalorder %s14, 0
    %p99 = por %p97, %p98
    %p100 = scmp.ne.s32.totalorder %s86, %s87
    %p101 = scmp.eq.s32.totalorder %s15, 3
    %p102 = por %p100, %p101
    %p104 = scmp.ne.s32.totalorder %s87, %s103
    %p105 = scmp.eq.s32.totalorder %s15, 0
    %p106 = por %p104, %p105
    %s107 = ssub.s32 %s16, %s28
    %s108 = ssub.s32 %s17, %s24
    %s109 = sor.u32 %s107, %s108
    %p110 = scmp.eq.s32.totalorder %s109, 0
    %s112 = sadd.s32 %s111, 1
    %s113 = scalar_select %p110, %s111, %s112
    %p116 = pneg %p110
    %p117 = scmp.eq.s32.totalorder %s9, 3
    %p118 = por %p116, %p117
    %p119 = scmp.ne.s32.totalorder %s111, %s114
    %p120 = scmp.eq.s32.totalorder %s9, 0
    %p121 = por %p119, %p120
    %p122 = scmp.ne.s32.totalorder %s111, %s114
    %p123 = scmp.eq.s32.totalorder %s14, 3
    %p124 = por %p122, %p123
    %p125 = scmp.ne.s32.totalorder %s114, %s115
    %p126 = scmp.eq.s32.totalorder %s14, 0
    %p127 = por %p125, %p126
    %p128 = scmp.ne.s32.totalorder %s114, %s115
    %p129 = scmp.eq.s32.totalorder %s15, 3
    %p130 = por %p128, %p129
    %p132 = scmp.ne.s32.totalorder %s115, %s131
    %p133 = scmp.eq.s32.totalorder %s15, 0
    %p134 = por %p132, %p133
    %p135 = scmp.le.s32.totalorder 1, %s9
    %p136 = scmp.lt.s32.totalorder %s9, 5
    %p137 = pnand %p135, %p136
    %p138 = pneg %p137
    // Predicated region
    $region9: #{bottleneck_forward.3} parent=5 // pred_check
      _
    $region10: #{bottleneck_forward.3} parent=5 // pred_check_branch
      %140 = sbr.rel (%p137) target = $region12
    $region11: #{bottleneck_forward.3} parent=5 // pred_region
      %s141 = ssub.s32 %s9, 1
      // Predicated region
      $region13: #{bottleneck_forward.3} parent=11 // pred_check
        %p142 = pneg %p73
      $region14: #{bottleneck_forward.3} parent=11 // pred_check_branch
        %144 = sbr.rel (%p142) target = $region16
      $region15: #{bottleneck_forward.3} parent=11 // pred_region
        %p145 = scmp.lt.s32.totalorder %s19, 0
        %s146 = scalar_select %p145, %s19, 0
        %s147 = smul.addr %s146, 4
        %s148 = scalar_lea.vmem %s1, %s147
      $region16: #{bottleneck_forward.3} parent=11 // pred_fallthru
        _
      // Predicated region
      $region17: #{bottleneck_forward.3} parent=11 // pred_check
        %p149 = pneg %p99
      $region18: #{bottleneck_forward.3} parent=11 // pred_check_branch
        %151 = sbr.rel (%p149) target = $region20
      $region19: #{bottleneck_forward.3} parent=11 // pred_region
        %p152 = scmp.lt.s32.totalorder %s19, 0
        %s153 = scalar_select %p152, %s19, 0
        %s154 = scalar_lea.vmem %s2, %s153
      $region20: #{bottleneck_forward.3} parent=11 // pred_fallthru
        _
    $region12: #{bottleneck_forward.3} parent=5 // pred_fallthru
      _
    %p155 = scmp.lt.s32.totalorder %s9, 4
    // Predicated region
    $region21: #{bottleneck_forward.3} parent=5 // pred_check
      %p156 = pneg %p155
    $region22: #{bottleneck_forward.3} parent=5 // pred_check_branch
      %158 = sbr.rel (%p156) target = $region24
    $region23: #{bottleneck_forward.3} parent=5 // pred_region
      // Predicated region
      $region25: #{bottleneck_forward.3} parent=23 // pred_check
        %p159 = pneg %p41
      $region26: #{bottleneck_forward.3} parent=23 // pred_check_branch
        %161 = sbr.rel (%p159) target = $region28
      $region27: #{bottleneck_forward.3} parent=23 // pred_region
        %s162 = smul.u32 16, %s16
        %p163 = scmp.lt.s32.totalorder %s162, 63
        %s164 = scalar_select %p163, %s162, 63
        %s165 = smul.addr %s164, 8
        %s166 = scalar_lea.vmem %s0, %s165
        %s167 = smul.u32 16, %s16
      $region28: #{bottleneck_forward.3} parent=23 // pred_fallthru
        _
    $region24: #{bottleneck_forward.3} parent=5 // pred_fallthru
      _
    %p168 = scmp.le.s32.totalorder 1, %s9
    %p169 = scmp.lt.s32.totalorder %s9, 5
    %p170 = pnand %p168, %p169
    %p171 = pneg %p170
    // Predicated region
    $region29: #{bottleneck_forward.3} parent=5 // pred_check
      _
    $region30: #{bottleneck_forward.3} parent=5 // pred_check_branch
      %173 = sbr.rel (%p170) target = $region32
    $region31: #{bottleneck_forward.3} parent=5 // pred_region
      %s174 = ssub.s32 %s9, 1
      %s175 = smul.u32 16, %s18
      %p176 = scmp.lt.s32.totalorder %s175, 63
      %s177 = scalar_select %p176, %s175, 63
      %s178 = smul.addr %s177, 8
      %s179 = scalar_lea.vmem %s0, %s178
      %p180 = pneg %p47
      %p181 = pneg %p44
      %p182 = scmp.lt.s32.totalorder %s19, 0
      %s183 = scalar_select %p182, %s19, 0
      %s184 = smul.addr %s183, 4
      %s185 = scalar_lea.vmem %s1, %s184
      %p186 = pneg %p73
      %p187 = pneg %p70
      %p188 = scmp.lt.s32.totalorder %s19, 0
      %s189 = scalar_select %p188, %s19, 0
      %s190 = scalar_lea.vmem %s2, %s189
      %p191 = pneg %p99
      %p192 = pneg %p96
      %p193 = pneg %p127
      %p194 = pneg %p124
      %s195 = smul.u32 16, %s18
      %p196 = scmp.lt.s32.totalorder %s195, 63
      %s197 = scalar_select %p196, %s195, 63
      %p198 = scmp.lt.s32.totalorder %s19, 0
      %s199 = scalar_select %p198, %s19, 0
      %s200 = sadd.s32 %s199, %s197
      %s201 = smul.addr %s200, 4
      %s202 = scalar_lea.vmem %s3, %s201
      %s203 = smul.u32 16, %s18
      %p204 = scmp.lt.s32.totalorder %s203, 63
      %s205 = scalar_select %p204, %s203, 63
      %s206 = smul.addr %s205, 8
      %s207 = scalar_lea.vmem %s0, %s206
      %s208 = smul.u32 16, %s18
      %p209 = scmp.lt.s32.totalorder %s19, 0
      %s210 = scalar_select %p209, %s19, 0
      %s211 = smul.addr %s210, 4
      %s212 = scalar_lea.vmem %s1, %s211
      %p213 = scmp.lt.s32.totalorder %s19, 0
      %s214 = scalar_select %p213, %s19, 0
      %s215 = scalar_lea.vmem %s2, %s214
      %s216 = smul.u32 16, %s18
      %p217 = scmp.lt.s32.totalorder %s216, 63
      %s218 = scalar_select %p217, %s216, 63
      %p219 = scmp.lt.s32.totalorder %s19, 0
      %s220 = scalar_select %p219, %s19, 0
      %s221 = sadd.s32 %s220, %s218
      %s222 = smul.addr %s221, 4
      %s223 = scalar_lea.vmem %s3, %s222
      %s224 = smul.u32 16, %s18
      %v226 = vld [vmem:[%s207] sm:$0xff]
      %v227 = vld [vmem:[%s207 + $0x8] sm:$0xff]
      %v228 = vld [vmem:[%s207 + $0x10] sm:$0xff]
      %v229 = vld [vmem:[%s207 + $0x18] sm:$0xff]
      %v230 = vld [vmem:[%s207 + $0x20] sm:$0xff]
      %v231 = vld [vmem:[%s207 + $0x28] sm:$0xff]
      %v232 = vld [vmem:[%s207 + $0x30] sm:$0xff]
      %v233 = vld [vmem:[%s207 + $0x38] sm:$0xff]
      %v234 = vld [vmem:[%s207 + $0x40] sm:$0xff]
      %v235 = vld [vmem:[%s207 + $0x48] sm:$0xff]
      %v236 = vld [vmem:[%s207 + $0x50] sm:$0xff]
      %v237 = vld [vmem:[%s207 + $0x58] sm:$0xff]
      %v238 = vld [vmem:[%s207 + $0x60] sm:$0xff]
      %v239 = vld [vmem:[%s207 + $0x68] sm:$0xff]
      %v240 = vld [vmem:[%s207 + $0x70] sm:$0xff]
      %v241 = vld [vmem:[%s207 + $0x78] sm:$0xff]
      %v242 = vpack.c.bf16 %v227, %v226
      %v243 = vpack.c.bf16 %v229, %v228
      %v244 = vpack.c.bf16 %v231, %v230
      %v245 = vpack.c.bf16 %v233, %v232
      %v246 = vpack.c.bf16 %v235, %v234
      %v247 = vpack.c.bf16 %v237, %v236
      %v248 = vpack.c.bf16 %v239, %v238
      %v249 = vpack.c.bf16 %v241, %v240
      %v250 = vld [vmem:[%s212] sm:$0xf]
      %v251 = vld [vmem:[%s215] sm:$0x1]
      %v253 = vlaneseq
      %v254 = vshrl.u32 %v253, 7
      %v255 = vsub.s32 0, %v254
      %v256 = vrot.slane %v251, %v255
      %vm258 = vcmask 64512
      %v260 = vsel %vm258, %v242, 0
      %v263 = vsel %vm258, %v243, 0
      %v266 = vsel %vm258, %v244, 0
      %v269 = vsel %vm258, %v245, 0
      %v272 = vsel %vm258, %v246, 0
      %v275 = vsel %vm258, %v247, 0
      %v278 = vsel %vm258, %v248, 0
      %v281 = vsel %vm258, %v249, 0
      %vm283 = vcmask 1043456
      %v285 = vsel %vm283, %v250, 0
      %287 = vmatprep.subr.bf16.mxu0 0
      %288 = vmatpush1.bf16.msra.mxu0 %v285
      %289 = vmatprep.subr.bf16.mxu0 0
      %290 = vmatpush1.bf16.msra.mxu0 0
      %291 = vmatprep.subr.bf16.mxu0 0
      %292 = vmatpush1.bf16.msra.mxu0 0
      %293 = vmatprep.subr.bf16.mxu0 0
      %294 = vmatpush1.bf16.msra.mxu0 0
      %295 = vmatprep.subr.bf16.mxu0 0
      %296 = vmatpush1.bf16.msra.mxu0 0
      %297 = vmatprep.subr.bf16.mxu0 0
      %298 = vmatpush1.bf16.msra.mxu0 0
      %299 = vmatprep.subr.bf16.mxu0 0
      %300 = vmatpush1.bf16.msra.mxu0 0
      %301 = vmatprep.subr.bf16.mxu0 0
      %302 = vmatpush1.bf16.msra.mxu0 0
      %303 = vmatprep.subr.bf16.mxu0 0
      %304 = vmatpush1.bf16.msra.mxu0 0
      %305 = vmatprep.subr.bf16.mxu0 0
      %306 = vmatpush1.bf16.msra.mxu0 0
      %307 = vmatprep.subr.bf16.mxu0 0
      %308 = vmatpush1.bf16.msra.mxu0 0
      %309 = vmatprep.subr.bf16.mxu0 0
      %310 = vmatpush1.bf16.msra.mxu0 0
      %311 = vmatprep.subr.bf16.mxu0 0
      %312 = vmatpush1.bf16.msra.mxu0 0
      %313 = vmatprep.subr.bf16.mxu0 0
      %314 = vmatpush1.bf16.msra.mxu0 0
      %315 = vmatprep.subr.bf16.mxu0 0
      %316 = vmatpush1.bf16.msra.mxu0 0
      %317 = vmatprep.subr.bf16.mxu0 0
      %318 = vmatpush1.bf16.msra.mxu0 0
      %319 = vmatprep.mubr.bf16.mxu0 0
      %320 = vmatmul.mubr.bf16.gmra.mrb[0].mxu0 %v260
      %v321 = vpop.f32.mrb[0].mxu0
      %v322 = vadd.f32 %v256, %v321
      %v323 = vpop.f32.mrb[0].mxu0
      %v324 = vpop.f32.mrb[0].mxu0
      %v325 = vadd.f32 %v256, %v324
      %v326 = vpop.f32.mrb[0].mxu0
      %327 = vmatprep.mubr.bf16.mxu0 0
      %328 = vmatmul.mubr.bf16.gmra.mrb[0].mxu0 %v263
      %v329 = vpop.f32.mrb[0].mxu0
      %v330 = vadd.f32 %v256, %v329
      %v331 = vpop.f32.mrb[0].mxu0
      %v332 = vpop.f32.mrb[0].mxu0
      %v333 = vadd.f32 %v256, %v332
      %v334 = vpop.f32.mrb[0].mxu0
      %335 = vmatprep.mubr.bf16.mxu0 0
      %336 = vmatmul.mubr.bf16.gmra.mrb[0].mxu0 %v266
      %v337 = vpop.f32.mrb[0].mxu0
      %v338 = vadd.f32 %v256, %v337
      %v339 = vpop.f32.mrb[0].mxu0
      %v340 = vpop.f32.mrb[0].mxu0
      %v341 = vadd.f32 %v256, %v340
      %v342 = vpop.f32.mrb[0].mxu0
      %343 = vmatprep.mubr.bf16.mxu0 0
      %344 = vmatmul.mubr.bf16.gmra.mrb[0].mxu0 %v269
      %v345 = vpop.f32.mrb[0].mxu0
      %v346 = vadd.f32 %v256, %v345
      %v347 = vpop.f32.mrb[0].mxu0
      %v348 = vpop.f32.mrb[0].mxu0
      %v349 = vadd.f32 %v256, %v348
      %v350 = vpop.f32.mrb[0].mxu0
      %351 = vmatprep.mubr.bf16.mxu0 0
      %352 = vmatmul.mubr.bf16.gmra.mrb[0].mxu0 %v272
      %v353 = vpop.f32.mrb[0].mxu0
      %v354 = vadd.f32 %v256, %v353
      %v355 = vpop.f32.mrb[0].mxu0
      %v356 = vpop.f32.mrb[0].mxu0
      %v357 = vadd.f32 %v256, %v356
      %v358 = vpop.f32.mrb[0].mxu0
      %359 = vmatprep.mubr.bf16.mxu0 0
      %360 = vmatmul.mubr.bf16.gmra.mrb[0].mxu0 %v275
      %v361 = vpop.f32.mrb[0].mxu0
      %v362 = vadd.f32 %v256, %v361
      %v363 = vpop.f32.mrb[0].mxu0
      %v364 = vpop.f32.mrb[0].mxu0
      %v365 = vadd.f32 %v256, %v364
      %v366 = vpop.f32.mrb[0].mxu0
      %367 = vmatprep.mubr.bf16.mxu0 0
      %368 = vmatmul.mubr.bf16.gmra.mrb[0].mxu0 %v278
      %v369 = vpop.f32.mrb[0].mxu0
      %v370 = vadd.f32 %v256, %v369
      %v371 = vpop.f32.mrb[0].mxu0
      %v372 = vpop.f32.mrb[0].mxu0
      %v373 = vadd.f32 %v256, %v372
      %v374 = vpop.f32.mrb[0].mxu0
      %375 = vmatprep.mubr.bf16.mxu0 0
      %376 = vmatmul.mubr.bf16.gmra.mrb[0].mxu0 %v281
      %v377 = vpop.f32.mrb[0].mxu0
      %v378 = vadd.f32 %v256, %v377
      %v379 = vpop.f32.mrb[0].mxu0
      %v380 = vpop.f32.mrb[0].mxu0
      %v381 = vadd.f32 %v256, %v380
      %v382 = vpop.f32.mrb[0].mxu0
      %383 = vdwg.mxu0
      %v384 = vmax.f32 %v322, 0.0
      %v385 = vmax.f32 %v325, 0.0
      %v386 = vmax.f32 %v330, 0.0
      %v387 = vmax.f32 %v333, 0.0
      %v388 = vmax.f32 %v338, 0.0
      %v389 = vmax.f32 %v341, 0.0
      %v390 = vmax.f32 %v346, 0.0
      %v391 = vmax.f32 %v349, 0.0
      %v392 = vmax.f32 %v354, 0.0
      %v393 = vmax.f32 %v357, 0.0
      %v394 = vmax.f32 %v362, 0.0
      %v395 = vmax.f32 %v365, 0.0
      %v396 = vmax.f32 %v370, 0.0
      %v397 = vmax.f32 %v373, 0.0
      %v398 = vmax.f32 %v378, 0.0
      %v399 = vmax.f32 %v381, 0.0
      %v400 = vpack.c.bf16 %v385, %v384
      %v401 = vpack.c.bf16 %v387, %v386
      %v402 = vpack.c.bf16 %v389, %v388
      %v403 = vpack.c.bf16 %v391, %v390
      %v404 = vpack.c.bf16 %v393, %v392
      %v405 = vpack.c.bf16 %v395, %v394
      %v406 = vpack.c.bf16 %v397, %v396
      %v407 = vpack.c.bf16 %v399, %v398
      %v416 = vunpack.c.l.b16 %v400
      %v417 = vunpack.c.h.b16 %v400
      %v418 = vunpack.c.l.b16 %v401
      %v419 = vunpack.c.h.b16 %v401
      %v420 = vunpack.c.l.b16 %v402
      %v421 = vunpack.c.h.b16 %v402
      %v422 = vunpack.c.l.b16 %v403
      %v423 = vunpack.c.h.b16 %v403
      %v424 = vunpack.c.l.b16 %v404
      %v425 = vunpack.c.h.b16 %v404
      %v426 = vunpack.c.l.b16 %v405
      %v427 = vunpack.c.h.b16 %v405
      %v428 = vunpack.c.l.b16 %v406
      %v429 = vunpack.c.h.b16 %v406
      %v430 = vunpack.c.l.b16 %v407
      %v431 = vunpack.c.h.b16 %v407
      %v432 = vpack.c.b16 %v416, %v416
      %v433 = vpack.c.b16 %v417, %v417
      %v434 = vpack.c.b16 %v418, %v418
      %v435 = vpack.c.b16 %v419, %v419
      %v436 = vpack.c.b16 %v420, %v420
      %v437 = vpack.c.b16 %v421, %v421
      %v438 = vpack.c.b16 %v422, %v422
      %v439 = vpack.c.b16 %v423, %v423
      %v440 = vpack.c.b16 %v424, %v424
      %v441 = vpack.c.b16 %v425, %v425
      %v442 = vpack.c.b16 %v426, %v426
      %v443 = vpack.c.b16 %v427, %v427
      %v444 = vpack.c.b16 %v428, %v428
      %v445 = vpack.c.b16 %v429, %v429
      %v446 = vpack.c.b16 %v430, %v430
      %v447 = vpack.c.b16 %v431, %v431
      %vm464 = vcmask 27648
      %465 = vst.msk [vmem:[%s223] sm:$0xf] %vm464, %v432
      %466 = vst.msk [vmem:[%s223 + $0x4] sm:$0xf] %vm464, %v433
      %467 = vst.msk [vmem:[%s223 + $0x8] sm:$0xf] %vm464, %v434
      %468 = vst.msk [vmem:[%s223 + $0xc] sm:$0xf] %vm464, %v435
      %469 = vst.msk [vmem:[%s223 + $0x10] sm:$0xf] %vm464, %v436
      %470 = vst.msk [vmem:[%s223 + $0x14] sm:$0xf] %vm464, %v437
      %471 = vst.msk [vmem:[%s223 + $0x18] sm:$0xf] %vm464, %v438
      %472 = vst.msk [vmem:[%s223 + $0x1c] sm:$0xf] %vm464, %v439
      %473 = vst.msk [vmem:[%s223 + $0x20] sm:$0xf] %vm464, %v440
      %474 = vst.msk [vmem:[%s223 + $0x24] sm:$0xf] %vm464, %v441
      %475 = vst.msk [vmem:[%s223 + $0x28] sm:$0xf] %vm464, %v442
      %476 = vst.msk [vmem:[%s223 + $0x2c] sm:$0xf] %vm464, %v443
      %477 = vst.msk [vmem:[%s223 + $0x30] sm:$0xf] %vm464, %v444
      %478 = vst.msk [vmem:[%s223 + $0x34] sm:$0xf] %vm464, %v445
      %479 = vst.msk [vmem:[%s223 + $0x38] sm:$0xf] %vm464, %v446
      %480 = vst.msk [vmem:[%s223 + $0x3c] sm:$0xf] %vm464, %v447
      %s481 = smul.u32 16, %s18
      %p482 = scmp.lt.s32.totalorder %s481, 63
      %s483 = scalar_select %p482, %s481, 63
      %p484 = scmp.lt.s32.totalorder %s19, 0
      %s485 = scalar_select %p484, %s19, 0
      %s486 = sadd.s32 %s485, %s483
      %s487 = smul.addr %s486, 4
      %s488 = scalar_lea.vmem %s3, %s487
      // Predicated region
      $region33: #{bottleneck_forward.3} parent=31 // pred_check
        %p489 = pneg %p124
      $region34: #{bottleneck_forward.3} parent=31 // pred_check_branch
        %491 = sbr.rel (%p489) target = $region36
      $region35: #{bottleneck_forward.3} parent=31 // pred_region
        %s492 = smul.u32 16, %s18
      $region36: #{bottleneck_forward.3} parent=31 // pred_fallthru
        _
    $region32: #{bottleneck_forward.3} parent=5 // pred_fallthru
      _
    %p493 = scmp.le.s32.totalorder 2, %s9
    // Predicated region
    $region37: #{bottleneck_forward.3} parent=5 // pred_check
      %p494 = pneg %p493
    $region38: #{bottleneck_forward.3} parent=5 // pred_check_branch
      %496 = sbr.rel (%p494) target = $region40
    $region39: #{bottleneck_forward.3} parent=5 // pred_region
      %s497 = ssub.s32 %s9, 2
      // Predicated region
      $region41: #{bottleneck_forward.3} parent=39 // pred_check
        %p498 = pneg %p130
      $region42: #{bottleneck_forward.3} parent=39 // pred_check_branch
        %500 = sbr.rel (%p498) target = $region44
      $region43: #{bottleneck_forward.3} parent=39 // pred_region
        %s501 = smul.u32 16, %s20
        %p502 = scmp.lt.s32.totalorder %s501, 63
        %s503 = scalar_select %p502, %s501, 63
        %p504 = scmp.lt.s32.totalorder %s21, 0
        %s505 = scalar_select %p504, %s21, 0
        %s506 = sadd.s32 %s505, %s503
        %s507 = smul.addr %s506, 4
        %s508 = scalar_lea.vmem %s3, %s507
      $region44: #{bottleneck_forward.3} parent=39 // pred_fallthru
        _
    $region40: #{bottleneck_forward.3} parent=5 // pred_fallthru
      _
  $region6: #{bottleneck_forward.3} parent=0 // loop_footer
    %s13 = sadd.s32 1, %s9
  $region7: #{bottleneck_forward.3} parent=0 // loop_footer_branch
    %8 = sbr.rel target = $region3
  $region8: #{bottleneck_forward.3} parent=0 // loop_exit
    _

// kernel: bottleneck_forward.5
$region0: #{bottleneck_forward.5}
  #allocation0 [shape = 'u32[]', space=smem, size = 0x4, offset = 0x4, fixed_abs, tag = 'smem constant byte address 0x4 - core index']
  #allocation1 [shape = 'u32[144,128]{1,0:T(1,128)}', space=vmem, size = 0x12000, scoped, tag = 'internal scratch']
  %s0 = inlined_call_operand.vmem [shape: bf16[128,4], index: 0, kind: input, shape index: {}]
  %s1 = inlined_call_operand.vmem [shape: bf16[4,16], index: 1, kind: input, shape index: {}]
  %s2 = inlined_call_operand.vmem [shape: f32[1,16], index: 2, kind: input, shape index: {}]
  %s3 = inlined_call_operand.vmem [shape: f32[128,8], index: 3, kind: input, shape index: {}]
  %s4 = inlined_call_operand.vmem [shape: bf16[8,16], index: 4, kind: input, shape index: {}]
  %s5 = inlined_call_operand.hbm [shape: bf16[128,16], index: 5, kind: output, shape index: {}]
  %s6 = sld [smem:[#allocation0]]
  $region53: #{bottleneck_forward.5} parent=0
    _
  %s8 = ssub.s32 1, %s6
  %s9 = scalar_select 0, %s8, %s6
  $region1: #{bottleneck_forward.5} parent=0
    #allocation2 [shape = 'u8[16384]{0}', space=vmem, size = 0x4000, scoped, tag = 'output window, operand 0']
    #allocation3 [shape = 's32[2]{0}', space=sflag, size = 0x8, scoped, tag = 'scoped memory for bottleneck_forward.5']
    %10 = vsyncpa [#allocation3], 0
    %s11 = scalar_lea.sflag [#allocation3], 1
    %12 = vsyncpa %s11, 0
    loop: start=0, step=1, limit=6
    $region2: #{bottleneck_forward.5} parent=1 // loop_pre_header
      _
    $region3: #{bottleneck_forward.5} parent=1 // loop_header
      %s14 = sphi 0, %s18
      %p15 = scmp.ge.s32.totalorder %s14, 6
      %s21 = sphi 0, %s33
      %s22 = sphi 0, %s29
      %s23 = sphi 0, %s21
      %s24 = sphi 0, %s22
      %s25 = sphi 0, %s23
      %s26 = sphi 0, %s24
      %s36 = sphi 0, %s38
      %s39 = sphi 0, %s36
      %s40 = sphi 0, %s39
      %s56 = sphi 0, %s40
      %s62 = sphi 0, %s64
      %s65 = sphi 0, %s62
      %s66 = sphi 0, %s65
      %s82 = sphi 0, %s66
      %s88 = sphi 0, %s90
      %s91 = sphi 0, %s88
      %s92 = sphi 0, %s91
      %s108 = sphi 0, %s92
      %s114 = sphi 0, %s116
      %s117 = sphi 0, %s114
      %s118 = sphi 0, %s117
      %s134 = sphi 0, %s118
      %s140 = sphi 0, %s142
      %s143 = sphi 0, %s140
      %s144 = sphi 0, %s143
      %s160 = sphi 0, %s144
      %s168 = sphi 0, %s170
      %s171 = sphi 0, %s168
      %s172 = sphi 0, %s171
      %s188 = sphi 0, %s172
    $region4: #{bottleneck_forward.5} parent=1 // loop_header_branch
      %17 = sbr.rel (%p15) target = $region8
    $region5: #{bottleneck_forward.5} parent=1 // loop_body
      %s19 = ssub.s32 %s14, 1
      %s20 = ssub.s32 %s14, 2
      %s27 = sadd.s32 1, %s22
      %p28 = scmp.ge.s32.totalorder %s27, 1
      %s29 = scalar_select %p28, 0, %s27
      %s30 = sadd.s32 1, %s21
      %s31 = scalar_select %p28, %s30, %s21
      %p32 = scmp.ge.s32.totalorder %s31, 4
      %s33 = scalar_select %p32, 0, %s31
      %s34 = ssub.s32 %s21, %s33
      %p35 = scmp.eq.s32.totalorder %s34, 0
      %s37 = sadd.s32 %s36, 1
      %s38 = scalar_select %p35, %s36, %s37
      %p41 = pneg %p35
      %p42 = scmp.eq.s32.totalorder %s14, 3
      %p43 = por %p41, %p42
      %p44 = scmp.ne.s32.totalorder %s36, %s39
      %p45 = scmp.eq.s32.totalorder %s14, 0
      %p46 = por %p44, %p45
      %p47 = scmp.ne.s32.totalorder %s36, %s39
      %p48 = scmp.eq.s32.totalorder %s19, 3
      %p49 = por %p47, %p48
      %p50 = scmp.ne.s32.totalorder %s39, %s40
      %p51 = scmp.eq.s32.totalorder %s19, 0
      %p52 = por %p50, %p51
      %p53 = scmp.ne.s32.totalorder %s39, %s40
      %p54 = scmp.eq.s32.totalorder %s20, 3
      %p55 = por %p53, %p54
      %p57 = scmp.ne.s32.totalorder %s40, %s56
      %p58 = scmp.eq.s32.totalorder %s20, 0
      %p59 = por %p57, %p58
      %s60 = ssub.s32 %s22, %s29
      %p61 = scmp.eq.s32.totalorder %s60, 0
      %s63 = sadd.s32 %s62, 1
      %s64 = scalar_select %p61, %s62, %s63
      %p67 = pneg %p61
      %p68 = scmp.eq.s32.totalorder %s14, 3
      %p69 = por %p67, %p68
      %p70 = scmp.ne.s32.totalorder %s62, %s65
      %p71 = scmp.eq.s32.totalorder %s14, 0
      %p72 = por %p70, %p71
      %p73 = scmp.ne.s32.totalorder %s62, %s65
      %p74 = scmp.eq.s32.totalorder %s19, 3
      %p75 = por %p73, %p74
      %p76 = scmp.ne.s32.totalorder %s65, %s66
      %p77 = scmp.eq.s32.totalorder %s19, 0
      %p78 = por %p76, %p77
      %p79 = scmp.ne.s32.totalorder %s65, %s66
      %p80 = scmp.eq.s32.totalorder %s20, 3
      %p81 = por %p79, %p80
      %p83 = scmp.ne.s32.totalorder %s66, %s82
      %p84 = scmp.eq.s32.totalorder %s20, 0
      %p85 = por %p83, %p84
      %s86 = ssub.s32 %s22, %s29
      %p87 = scmp.eq.s32.totalorder %s86, 0
      %s89 = sadd.s32 %s88, 1
      %s90 = scalar_select %p87, %s88, %s89
      %p93 = pneg %p87
      %p94 = scmp.eq.s32.totalorder %s14, 3
      %p95 = por %p93, %p94
      %p96 = scmp.ne.s32.totalorder %s88, %s91
      %p97 = scmp.eq.s32.totalorder %s14, 0
      %p98 = por %p96, %p97
      %p99 = scmp.ne.s32.totalorder %s88, %s91
      %p100 = scmp.eq.s32.totalorder %s19, 3
      %p101 = por %p99, %p100
      %p102 = scmp.ne.s32.totalorder %s91, %s92
      %p103 = scmp.eq.s32.totalorder %s19, 0
      %p104 = por %p102, %p103
      %p105 = scmp.ne.s32.totalorder %s91, %s92
      %p106 = scmp.eq.s32.totalorder %s20, 3
      %p107 = por %p105, %p106
      %p109 = scmp.ne.s32.totalorder %s92, %s108
      %p110 = scmp.eq.s32.totalorder %s20, 0
      %p111 = por %p109, %p110
      %s112 = ssub.s32 %s21, %s33
      %p113 = scmp.eq.s32.totalorder %s112, 0
      %s115 = sadd.s32 %s114, 1
      %s116 = scalar_select %p113, %s114, %s115
      %p119 = pneg %p113
      %p120 = scmp.eq.s32.totalorder %s14, 3
      %p121 = por %p119, %p120
      %p122 = scmp.ne.s32.totalorder %s114, %s117
      %p123 = scmp.eq.s32.totalorder %s14, 0
      %p124 = por %p122, %p123
      %p125 = scmp.ne.s32.totalorder %s114, %s117
      %p126 = scmp.eq.s32.totalorder %s19, 3
      %p127 = por %p125, %p126
      %p128 = scmp.ne.s32.totalorder %s117, %s118
      %p129 = scmp.eq.s32.totalorder %s19, 0
      %p130 = por %p128, %p129
      %p131 = scmp.ne.s32.totalorder %s117, %s118
      %p132 = scmp.eq.s32.totalorder %s20, 3
      %p133 = por %p131, %p132
      %p135 = scmp.ne.s32.totalorder %s118, %s134
      %p136 = scmp.eq.s32.totalorder %s20, 0
      %p137 = por %p135, %p136
      %s138 = ssub.s32 %s22, %s29
      %p139 = scmp.eq.s32.totalorder %s138, 0
      %s141 = sadd.s32 %s140, 1
      %s142 = scalar_select %p139, %s140, %s141
      %p145 = pneg %p139
      %p146 = scmp.eq.s32.totalorder %s14, 3
      %p147 = por %p145, %p146
      %p148 = scmp.ne.s32.totalorder %s140, %s143
      %p149 = scmp.eq.s32.totalorder %s14, 0
      %p150 = por %p148, %p149
      %p151 = scmp.ne.s32.totalorder %s140, %s143
      %p152 = scmp.eq.s32.totalorder %s19, 3
      %p153 = por %p151, %p152
      %p154 = scmp.ne.s32.totalorder %s143, %s144
      %p155 = scmp.eq.s32.totalorder %s19, 0
      %p156 = por %p154, %p155
      %p157 = scmp.ne.s32.totalorder %s143, %s144
      %p158 = scmp.eq.s32.totalorder %s20, 3
      %p159 = por %p157, %p158
      %p161 = scmp.ne.s32.totalorder %s144, %s160
      %p162 = scmp.eq.s32.totalorder %s20, 0
      %p163 = por %p161, %p162
      %s164 = ssub.s32 %s21, %s33
      %s165 = ssub.s32 %s22, %s29
      %s166 = sor.u32 %s164, %s165
      %p167 = scmp.eq.s32.totalorder %s166, 0
      %s169 = sadd.s32 %s168, 1
      %s170 = scalar_select %p167, %s168, %s169
      %p173 = pneg %p167
      %p174 = scmp.eq.s32.totalorder %s14, 3
      %p175 = por %p173, %p174
      %p176 = scmp.ne.s32.totalorder %s168, %s171
      %p177 = scmp.eq.s32.totalorder %s14, 0
      %p178 = por %p176, %p177
      %p179 = scmp.ne.s32.totalorder %s168, %s171
      %p180 = scmp.eq.s32.totalorder %s19, 3
      %p181 = por %p179, %p180
      %p182 = scmp.ne.s32.totalorder %s171, %s172
      %p183 = scmp.eq.s32.totalorder %s19, 0
      %p184 = por %p182, %p183
      %p185 = scmp.ne.s32.totalorder %s171, %s172
      %p186 = scmp.eq.s32.totalorder %s20, 3
      %p187 = por %p185, %p186
      %p189 = scmp.ne.s32.totalorder %s172, %s188
      %p190 = scmp.eq.s32.totalorder %s20, 0
      %p191 = por %p189, %p190
      %p192 = scmp.le.s32.totalorder 1, %s14
      %p193 = scmp.lt.s32.totalorder %s14, 5
      %p194 = pnand %p192, %p193
      %p195 = pneg %p194
      // Predicated region
      $region9: #{bottleneck_forward.5} parent=5 // pred_check
        _
      $region10: #{bottleneck_forward.5} parent=5 // pred_check_branch
        %197 = sbr.rel (%p194) target = $region12
      $region11: #{bottleneck_forward.5} parent=5 // pred_region
        %s198 = ssub.s32 %s14, 1
        // Predicated region
        $region13: #{bottleneck_forward.5} parent=11 // pred_check
          %p199 = pneg %p78
        $region14: #{bottleneck_forward.5} parent=11 // pred_check_branch
          %201 = sbr.rel (%p199) target = $region16
        $region15: #{bottleneck_forward.5} parent=11 // pred_region
          %p202 = scmp.lt.s32.totalorder %s24, 0
          %s203 = scalar_select %p202, %s24, 0
          %s204 = smul.addr %s203, 2
          %s205 = scalar_lea.vmem %s1, %s204
        $region16: #{bottleneck_forward.5} parent=11 // pred_fallthru
          _
        // Predicated region
        $region17: #{bottleneck_forward.5} parent=11 // pred_check
          %p206 = pneg %p104
        $region18: #{bottleneck_forward.5} parent=11 // pred_check_branch
          %208 = sbr.rel (%p206) target = $region20
        $region19: #{bottleneck_forward.5} parent=11 // pred_region
          %p209 = scmp.lt.s32.totalorder %s24, 0
          %s210 = scalar_select %p209, %s24, 0
          %s211 = scalar_lea.vmem %s2, %s210
        $region20: #{bottleneck_forward.5} parent=11 // pred_fallthru
          _
        // Predicated region
        $region21: #{bottleneck_forward.5} parent=11 // pred_check
          %p212 = pneg %p156
        $region22: #{bottleneck_forward.5} parent=11 // pred_check_branch
          %214 = sbr.rel (%p212) target = $region24
        $region23: #{bottleneck_forward.5} parent=11 // pred_region
          %p215 = scmp.lt.s32.totalorder %s24, 0
          %s216 = scalar_select %p215, %s24, 0
          %s217 = smul.addr %s216, 4
          %s218 = scalar_lea.vmem %s4, %s217
        $region24: #{bottleneck_forward.5} parent=11 // pred_fallthru
          _
      $region12: #{bottleneck_forward.5} parent=5 // pred_fallthru
        _
      %p219 = scmp.lt.s32.totalorder %s14, 4
      // Predicated region
      $region25: #{bottleneck_forward.5} parent=5 // pred_check
        %p220 = pneg %p219
      $region26: #{bottleneck_forward.5} parent=5 // pred_check_branch
        %222 = sbr.rel (%p220) target = $region28
      $region27: #{bottleneck_forward.5} parent=5 // pred_region
        // Predicated region
        $region29: #{bottleneck_forward.5} parent=27 // pred_check
          %p223 = pneg %p46
        $region30: #{bottleneck_forward.5} parent=27 // pred_check_branch
          %225 = sbr.rel (%p223) target = $region32
        $region31: #{bottleneck_forward.5} parent=27 // pred_region
          %s226 = smul.u32 4, %s21
          %p227 = scmp.lt.s32.totalorder %s226, 15
          %s228 = scalar_select %p227, %s226, 15
          %s229 = smul.addr %s228, 4
          %s230 = scalar_lea.vmem %s0, %s229
          %s231 = smul.u32 4, %s21
        $region32: #{bottleneck_forward.5} parent=27 // pred_fallthru
          _
        // Predicated region
        $region33: #{bottleneck_forward.5} parent=27 // pred_check
          %p232 = pneg %p124
        $region34: #{bottleneck_forward.5} parent=27 // pred_check_branch
          %234 = sbr.rel (%p232) target = $region36
        $region35: #{bottleneck_forward.5} parent=27 // pred_region
          %s235 = smul.u32 4, %s21
          %p236 = scmp.lt.s32.totalorder %s235, 15
          %s237 = scalar_select %p236, %s235, 15
          %s238 = smul.addr %s237, 8
          %s239 = scalar_lea.vmem %s3, %s238
          %s240 = smul.u32 4, %s21
        $region36: #{bottleneck_forward.5} parent=27 // pred_fallthru
          _
      $region28: #{bottleneck_forward.5} parent=5 // pred_fallthru
        _
      %p241 = scmp.le.s32.totalorder 1, %s14
      %p242 = scmp.lt.s32.totalorder %s14, 5
      %p243 = pnand %p241, %p242
      %p244 = pneg %p243
      // Predicated region
      $region37: #{bottleneck_forward.5} parent=5 // pred_check
        _
      $region38: #{bottleneck_forward.5} parent=5 // pred_check_branch
        %246 = sbr.rel (%p243) target = $region40
      $region39: #{bottleneck_forward.5} parent=5 // pred_region
        %s247 = ssub.s32 %s14, 1
        %s248 = smul.u32 4, %s23
        %p249 = scmp.lt.s32.totalorder %s248, 15
        %s250 = scalar_select %p249, %s248, 15
        %s251 = smul.addr %s250, 4
        %s252 = scalar_lea.vmem %s0, %s251
        %p253 = pneg %p52
        %p254 = pneg %p49
        %p255 = scmp.lt.s32.totalorder %s24, 0
        %s256 = scalar_select %p255, %s24, 0
        %s257 = smul.addr %s256, 2
        %s258 = scalar_lea.vmem %s1, %s257
        %p259 = pneg %p78
        %p260 = pneg %p75
        %p261 = scmp.lt.s32.totalorder %s24, 0
        %s262 = scalar_select %p261, %s24, 0
        %s263 = scalar_lea.vmem %s2, %s262
        %p264 = pneg %p104
        %p265 = pneg %p101
        %s266 = smul.u32 4, %s23
        %p267 = scmp.lt.s32.totalorder %s266, 15
        %s268 = scalar_select %p267, %s266, 15
        %s269 = smul.addr %s268, 8
        %s270 = scalar_lea.vmem %s3, %s269
        %p271 = pneg %p130
        %p272 = pneg %p127
        %p273 = scmp.lt.s32.totalorder %s24, 0
        %s274 = scalar_select %p273, %s24, 0
        %s275 = smul.addr %s274, 4
        %s276 = scalar_lea.vmem %s4, %s275
        %p277 = pneg %p156
        %p278 = pneg %p153
        %p279 = pneg %p184
        %p280 = pneg %p181
        %s281 = sand.u32 %s171, 1
        %s282 = scalar_lea.sflag [#allocation3], %s281
        %s283 = sand.u32 %s171, 1
        %s284 = smul.addr %s283, 16
        %s285 = scalar_lea.vmem [#allocation2], %s284
        %s286 = smul.u32 4, %s23
        %p287 = scmp.lt.s32.totalorder %s286, 15
        %s288 = scalar_select %p287, %s286, 15
        %s289 = smul.addr %s288, 4
        %s290 = scalar_lea.vmem %s0, %s289
        %s291 = smul.u32 4, %s23
        %p292 = scmp.lt.s32.totalorder %s24, 0
        %s293 = scalar_select %p292, %s24, 0
        %s294 = smul.addr %s293, 2
        %s295 = scalar_lea.vmem %s1, %s294
        %p296 = scmp.lt.s32.totalorder %s24, 0
        %s297 = scalar_select %p296, %s24, 0
        %s298 = scalar_lea.vmem %s2, %s297
        %s299 = smul.u32 4, %s23
        %p300 = scmp.lt.s32.totalorder %s299, 15
        %s301 = scalar_select %p300, %s299, 15
        %s302 = smul.addr %s301, 8
        %s303 = scalar_lea.vmem %s3, %s302
        %s304 = smul.u32 4, %s23
        %p305 = scmp.lt.s32.totalorder %s24, 0
        %s306 = scalar_select %p305, %s24, 0
        %s307 = smul.addr %s306, 4
        %s308 = scalar_lea.vmem %s4, %s307
        %s309 = smul.u32 4, %s23
        %v311 = vld [vmem:[%s290] sm:$0xf]
        %v312 = vld [vmem:[%s290 + $0x4] sm:$0xf]
        %v313 = vld [vmem:[%s290 + $0x8] sm:$0xf]
        %v314 = vld [vmem:[%s290 + $0xc] sm:$0xf]
        %v315 = vld [vmem:[%s303] sm:$0xff]
        %v316 = vld [vmem:[%s303 + $0x8] sm:$0xff]
        %v317 = vld [vmem:[%s303 + $0x10] sm:$0xff]
        %v318 = vld [vmem:[%s303 + $0x18] sm:$0xff]
        %v319 = vpack.c.bf16 %v316, %v315
        %v320 = vpack.c.bf16 %v318, %v317
        %v321 = vld [vmem:[%s295] sm:$0x3]
        %v322 = vld [vmem:[%s308] sm:$0xf]
        %vm323 = vcmask 64512
        %v325 = vsel %vm323, %v319, 0
        %v328 = vsel %vm323, %v320, 0
        %vm330 = vcmask 1043456
        %v332 = vsel %vm330, %v322, 0
        %334 = vmatprep.subr.bf16.mxu0 0
        %335 = vmatpush1.bf16.msra.mxu0 %v332
        %336 = vmatprep.subr.bf16.mxu0 0
        %337 = vmatpush1.bf16.msra.mxu0 0
        %338 = vmatprep.subr.bf16.mxu0 0
        %339 = vmatpush1.bf16.msra.mxu0 0
        %340 = vmatprep.subr.bf16.mxu0 0
        %341 = vmatpush1.bf16.msra.mxu0 0
        %342 = vmatprep.subr.bf16.mxu0 0
        %343 = vmatpush1.bf16.msra.mxu0 0
        %344 = vmatprep.subr.bf16.mxu0 0
        %345 = vmatpush1.bf16.msra.mxu0 0
        %346 = vmatprep.subr.bf16.mxu0 0
        %347 = vmatpush1.bf16.msra.mxu0 0
        %348 = vmatprep.subr.bf16.mxu0 0
        %349 = vmatpush1.bf16.msra.mxu0 0
        %350 = vmatprep.subr.bf16.mxu0 0
        %351 = vmatpush1.bf16.msra.mxu0 0
        %352 = vmatprep.subr.bf16.mxu0 0
        %353 = vmatpush1.bf16.msra.mxu0 0
        %354 = vmatprep.subr.bf16.mxu0 0
        %355 = vmatpush1.bf16.msra.mxu0 0
        %356 = vmatprep.subr.bf16.mxu0 0
        %357 = vmatpush1.bf16.msra.mxu0 0
        %358 = vmatprep.subr.bf16.mxu0 0
        %359 = vmatpush1.bf16.msra.mxu0 0
        %360 = vmatprep.subr.bf16.mxu0 0
        %361 = vmatpush1.bf16.msra.mxu0 0
        %362 = vmatprep.subr.bf16.mxu0 0
        %363 = vmatpush1.bf16.msra.mxu0 0
        %364 = vmatprep.subr.bf16.mxu0 0
        %365 = vmatpush1.bf16.msra.mxu0 0
        %366 = vmatprep.mubr.bf16.mxu0 0
        %367 = vmatmul.mubr.bf16.gmra.mrb[0].mxu0 %v325
        %v368 = vpop.f32.mrb[0].mxu0
        %v369 = vadd.f32 0.0, %v368
        %v370 = vpop.f32.mrb[0].mxu0
        %v371 = vpop.f32.mrb[0].mxu0
        %v372 = vadd.f32 0.0, %v371
        %v373 = vpop.f32.mrb[0].mxu0
        %374 = vmatprep.mubr.bf16.mxu0 0
        %375 = vmatmul.mubr.bf16.gmra.mrb[0].mxu0 %v328
        %v376 = vpop.f32.mrb[0].mxu0
        %v377 = vadd.f32 0.0, %v376
        %v378 = vpop.f32.mrb[0].mxu0
        %v379 = vpop.f32.mrb[0].mxu0
        %v380 = vadd.f32 0.0, %v379
        %v381 = vpop.f32.mrb[0].mxu0
        %382 = vdwg.mxu0
        %v387 = vunpack.c.l.b16 %v311
        %v388 = vunpack.c.l.b16 %v312
        %v389 = vunpack.c.l.b16 %v313
        %v390 = vunpack.c.l.b16 %v314
        %v391 = vpack.c.b16 %v388, %v387
        %v392 = vpack.c.b16 %v390, %v389
        %vm393 = vcmask 31744
        %v395 = vsel %vm393, %v391, 0
        %v398 = vsel %vm393, %v392, 0
        %vm400 = vcmask 1041408
        %v402 = vsel %vm400, %v321, 0
        %404 = vmatprep.subr.bf16.mxu0 0
        %405 = vmatpush1.bf16.msra.mxu0 %v402
        %406 = vmatprep.subr.bf16.mxu0 0
        %407 = vmatpush1.bf16.msra.mxu0 0
        %408 = vmatprep.subr.bf16.mxu0 0
        %409 = vmatpush1.bf16.msra.mxu0 0
        %410 = vmatprep.subr.bf16.mxu0 0
        %411 = vmatpush1.bf16.msra.mxu0 0
        %412 = vmatprep.subr.bf16.mxu0 0
        %413 = vmatpush1.bf16.msra.mxu0 0
        %414 = vmatprep.subr.bf16.mxu0 0
        %415 = vmatpush1.bf16.msra.mxu0 0
        %416 = vmatprep.subr.bf16.mxu0 0
        %417 = vmatpush1.bf16.msra.mxu0 0
        %418 = vmatprep.subr.bf16.mxu0 0
        %419 = vmatpush1.bf16.msra.mxu0 0
        %420 = vmatprep.subr.bf16.mxu0 0
        %421 = vmatpush1.bf16.msra.mxu0 0
        %422 = vmatprep.subr.bf16.mxu0 0
        %423 = vmatpush1.bf16.msra.mxu0 0
        %424 = vmatprep.subr.bf16.mxu0 0
        %425 = vmatpush1.bf16.msra.mxu0 0
        %426 = vmatprep.subr.bf16.mxu0 0
        %427 = vmatpush1.bf16.msra.mxu0 0
        %428 = vmatprep.subr.bf16.mxu0 0
        %429 = vmatpush1.bf16.msra.mxu0 0
        %430 = vmatprep.subr.bf16.mxu0 0
        %431 = vmatpush1.bf16.msra.mxu0 0
        %432 = vmatprep.subr.bf16.mxu0 0
        %433 = vmatpush1.bf16.msra.mxu0 0
        %434 = vmatprep.subr.bf16.mxu0 0
        %435 = vmatpush1.bf16.msra.mxu0 0
        %436 = vmatprep.mubr.bf16.mxu0 0
        %437 = vmatmul.mubr.bf16.gmra.mrb[0].mxu0 %v395
        %v438 = vpop.f32.mrb[0].mxu0
        %v439 = vadd.f32 %v369, %v438
        %v440 = vpop.f32.mrb[0].mxu0
        %v441 = vpop.f32.mrb[0].mxu0
        %v442 = vadd.f32 %v372, %v441
        %v443 = vpop.f32.mrb[0].mxu0
        %444 = vmatprep.mubr.bf16.mxu0 0
        %445 = vmatmul.mubr.bf16.gmra.mrb[0].mxu0 %v398
        %v446 = vpop.f32.mrb[0].mxu0
        %v447 = vadd.f32 %v377, %v446
        %v448 = vpop.f32.mrb[0].mxu0
        %v449 = vpop.f32.mrb[0].mxu0
        %v450 = vadd.f32 %v380, %v449
        %v451 = vpop.f32.mrb[0].mxu0
        %452 = vdwg.mxu0
        %v453 = vld [vmem:[%s298] sm:$0x1]
        %v455 = vlaneseq
        %v456 = vshrl.u32 %v455, 7
        %v457 = vsub.s32 0, %v456
        %v458 = vrot.slane %v453, %v457
        %v460 = vadd.f32 %v439, %v458
        %v461 = vadd.f32 %v442, %v458
        %v462 = vadd.f32 %v447, %v458
        %v463 = vadd.f32 %v450, %v458
        %v464 = vmax.f32 %v460, 0.0
        %v465 = vmax.f32 %v461, 0.0
        %v466 = vmax.f32 %v462, 0.0
        %v467 = vmax.f32 %v463, 0.0
        %v468 = vpack.c.bf16 %v465, %v464
        %v469 = vpack.c.bf16 %v467, %v466
        %v472 = vunpack.c.l.b16 %v468
        %v473 = vunpack.c.h.b16 %v468
        %v474 = vunpack.c.l.b16 %v469
        %v475 = vunpack.c.h.b16 %v469
        %v476 = vpack.c.b16 %v472, %v472
        %v477 = vpack.c.b16 %v473, %v473
        %v478 = vpack.c.b16 %v474, %v474
        %v479 = vpack.c.b16 %v475, %v475
        %vm484 = vcmask 125952
        %485 = vst.msk [vmem:[%s285] sm:$0xf] %vm484, %v476
        %486 = vst.msk [vmem:[%s285 + $0x4] sm:$0xf] %vm484, %v477
        %487 = vst.msk [vmem:[%s285 + $0x8] sm:$0xf] %vm484, %v478
        %488 = vst.msk [vmem:[%s285 + $0xc] sm:$0xf] %vm484, %v479
        %s489 = sand.u32 %s171, 1
        %s490 = scalar_lea.sflag [#allocation3], %s489
        %s491 = sand.u32 %s171, 1
        %s492 = smul.addr %s491, 16
        %s493 = scalar_lea.vmem [#allocation2], %s492
        // Predicated region
        $region41: #{bottleneck_forward.5} parent=39 // pred_check
          %p494 = pneg %p181
        $region42: #{bottleneck_forward.5} parent=39 // pred_check_branch
          %496 = sbr.rel (%p494) target = $region44
        $region43: #{bottleneck_forward.5} parent=39 // pred_region
          %s497 = smul.u32 4, %s23
          %s499 = ssub.s32 256, 256
          %500 = vsyncadd %s490, %s499
          %s501 = sadd.s32 %s24, %s497
          %s502 = smul.addr %s501, 64
          %s503 = scalar_lea.hbm %s5, %s502
          %s504 = sshll.u32 %s493, 4
          %s505 = int_to_ptr.vmem [resolvable:$true] %s504
          %510 = dma.vmem_to_hbm [thread:$0]  %s505, 256, %s503, %s490, 64, 64, 4
        $region44: #{bottleneck_forward.5} parent=39 // pred_fallthru
          _
      $region40: #{bottleneck_forward.5} parent=5 // pred_fallthru
        _
      %p511 = scmp.le.s32.totalorder 2, %s14
      // Predicated region
      $region45: #{bottleneck_forward.5} parent=5 // pred_check
        %p512 = pneg %p511
      $region46: #{bottleneck_forward.5} parent=5 // pred_check_branch
        %514 = sbr.rel (%p512) target = $region48
      $region47: #{bottleneck_forward.5} parent=5 // pred_region
        %s515 = ssub.s32 %s14, 2
        // Predicated region
        $region49: #{bottleneck_forward.5} parent=47 // pred_check
          %p516 = pneg %p187
        $region50: #{bottleneck_forward.5} parent=47 // pred_check_branch
          %518 = sbr.rel (%p516) target = $region52
        $region51: #{bottleneck_forward.5} parent=47 // pred_region
          %s519 = sand.u32 %s172, 1
          %s520 = scalar_lea.sflag [#allocation3], %s519
          %s521 = sand.u32 %s172, 1
          %s522 = smul.addr %s521, 16
          %s523 = scalar_lea.vmem [#allocation2], %s522
          %524 = dma.done %s520, 256
        $region52: #{bottleneck_forward.5} parent=47 // pred_fallthru
          _
      $region48: #{bottleneck_forward.5} parent=5 // pred_fallthru
        _
    $region6: #{bottleneck_forward.5} parent=1 // loop_footer
      %s18 = sadd.s32 1, %s14
    $region7: #{bottleneck_forward.5} parent=1 // loop_footer_branch
      %13 = sbr.rel target = $region3
    $region8: #{bottleneck_forward.5} parent=1 // loop_exit
      _
    %525 = vsyncpa [#allocation3], 1
    %s526 = scalar_lea.sflag [#allocation3], 1
    %527 = vsyncpa %s526, 1

// kernel: bottleneck_forward.4
$region0: #{bottleneck_forward.4}
  #allocation0 [shape = 'u32[]', space=smem, size = 0x4, offset = 0x4, fixed_abs, tag = 'smem constant byte address 0x4 - core index']
  #allocation1 [shape = 'u32[144,128]{1,0:T(1,128)}', space=vmem, size = 0x12000, scoped, tag = 'internal scratch']
  #allocation2 [shape = 'bf16[4,8,36]{2,1,0:T(8,128)(2,1)}', space=vmem, size = 0x2000, scoped, tag = 'scratch operand']
  %s0 = inlined_call_operand.vmem [shape: bf16[8,9,9,4], index: 0, kind: input, shape index: {}]
  %s1 = inlined_call_operand.vmem [shape: bf16[36,4], index: 1, kind: input, shape index: {}]
  %s2 = inlined_call_operand.vmem [shape: f32[1,4], index: 2, kind: input, shape index: {}]
  %s3 = inlined_call_operand.vmem [shape: bf16[2,8,8,4], index: 3, kind: output, shape index: {}]
  %s4 = sld [smem:[#allocation0]]
  $region45: #{bottleneck_forward.4} parent=0
    _
  %s6 = ssub.s32 1, %s4
  %s7 = scalar_select 0, %s6, %s4
  loop: start=0, step=1, limit=6
  $region2: #{bottleneck_forward.4} parent=0 // loop_pre_header
    _
  $region3: #{bottleneck_forward.4} parent=0 // loop_header
    %s9 = sphi 0, %s13
    %p10 = scmp.ge.s32.totalorder %s9, 6
    %s16 = sphi 0, %s28
    %s17 = sphi 0, %s24
    %s18 = sphi 0, %s16
    %s19 = sphi 0, %s17
    %s20 = sphi 0, %s18
    %s21 = sphi 0, %s19
    %s31 = sphi 0, %s33
    %s34 = sphi 0, %s31
    %s35 = sphi 0, %s34
    %s51 = sphi 0, %s35
    %s55 = sphi 0, %s55
    %s57 = sphi 0, %s55
    %s58 = sphi 0, %s57
    %s72 = sphi 0, %s58
    %s76 = sphi 0, %s76
    %s78 = sphi 0, %s76
    %s79 = sphi 0, %s78
    %s93 = sphi 0, %s79
    %s101 = sphi 0, %s103
    %s104 = sphi 0, %s101
    %s105 = sphi 0, %s104
    %s121 = sphi 0, %s105
  $region4: #{bottleneck_forward.4} parent=0 // loop_header_branch
    %12 = sbr.rel (%p10) target = $region8
  $region5: #{bottleneck_forward.4} parent=0 // loop_body
    %s14 = ssub.s32 %s9, 1
    %s15 = ssub.s32 %s9, 2
    %s22 = sadd.s32 1, %s17
    %p23 = scmp.ge.s32.totalorder %s22, 2
    %s24 = scalar_select %p23, 0, %s22
    %s25 = sadd.s32 1, %s16
    %s26 = scalar_select %p23, %s25, %s16
    %p27 = scmp.ge.s32.totalorder %s26, 2
    %s28 = scalar_select %p27, 0, %s26
    %s29 = ssub.s32 %s16, %s28
    %p30 = scmp.eq.s32.totalorder %s29, 0
    %s32 = sadd.s32 %s31, 1
    %s33 = scalar_select %p30, %s31, %s32
    %p36 = pneg %p30
    %p37 = scmp.eq.s32.totalorder %s9, 3
    %p38 = por %p36, %p37
    %p39 = scmp.ne.s32.totalorder %s31, %s34
    %p40 = scmp.eq.s32.totalorder %s9, 0
    %p41 = por %p39, %p40
    %p42 = scmp.ne.s32.totalorder %s31, %s34
    %p43 = scmp.eq.s32.totalorder %s14, 3
    %p44 = por %p42, %p43
    %p45 = scmp.ne.s32.totalorder %s34, %s35
    %p46 = scmp.eq.s32.totalorder %s14, 0
    %p47 = por %p45, %p46
    %p48 = scmp.ne.s32.totalorder %s34, %s35
    %p49 = scmp.eq.s32.totalorder %s15, 3
    %p50 = por %p48, %p49
    %p52 = scmp.ne.s32.totalorder %s35, %s51
    %p53 = scmp.eq.s32.totalorder %s15, 0
    %p54 = por %p52, %p53
    %s56 = sadd.s32 %s55, 1
    %p59 = scmp.eq.s32.totalorder %s9, 3
    %p60 = scmp.ne.s32.totalorder %s55, %s57
    %p61 = scmp.eq.s32.totalorder %s9, 0
    %p62 = por %p60, %p61
    %p63 = scmp.ne.s32.totalorder %s55, %s57
    %p64 = scmp.eq.s32.totalorder %s14, 3
    %p65 = por %p63, %p64
    %p66 = scmp.ne.s32.totalorder %s57, %s58
    %p67 = scmp.eq.s32.totalorder %s14, 0
    %p68 = por %p66, %p67
    %p69 = scmp.ne.s32.totalorder %s57, %s58
    %p70 = scmp.eq.s32.totalorder %s15, 3
    %p71 = por %p69, %p70
    %p73 = scmp.ne.s32.totalorder %s58, %s72
    %p74 = scmp.eq.s32.totalorder %s15, 0
    %p75 = por %p73, %p74
    %s77 = sadd.s32 %s76, 1
    %p80 = scmp.eq.s32.totalorder %s9, 3
    %p81 = scmp.ne.s32.totalorder %s76, %s78
    %p82 = scmp.eq.s32.totalorder %s9, 0
    %p83 = por %p81, %p82
    %p84 = scmp.ne.s32.totalorder %s76, %s78
    %p85 = scmp.eq.s32.totalorder %s14, 3
    %p86 = por %p84, %p85
    %p87 = scmp.ne.s32.totalorder %s78, %s79
    %p88 = scmp.eq.s32.totalorder %s14, 0
    %p89 = por %p87, %p88
    %p90 = scmp.ne.s32.totalorder %s78, %s79
    %p91 = scmp.eq.s32.totalorder %s15, 3
    %p92 = por %p90, %p91
    %p94 = scmp.ne.s32.totalorder %s79, %s93
    %p95 = scmp.eq.s32.totalorder %s15, 0
    %p96 = por %p94, %p95
    %s97 = ssub.s32 %s16, %s28
    %s98 = ssub.s32 %s17, %s24
    %s99 = sor.u32 %s97, %s98
    %p100 = scmp.eq.s32.totalorder %s99, 0
    %s102 = sadd.s32 %s101, 1
    %s103 = scalar_select %p100, %s101, %s102
    %p106 = pneg %p100
    %p107 = scmp.eq.s32.totalorder %s9, 3
    %p108 = por %p106, %p107
    %p109 = scmp.ne.s32.totalorder %s101, %s104
    %p110 = scmp.eq.s32.totalorder %s9, 0
    %p111 = por %p109, %p110
    %p112 = scmp.ne.s32.totalorder %s101, %s104
    %p113 = scmp.eq.s32.totalorder %s14, 3
    %p114 = por %p112, %p113
    %p115 = scmp.ne.s32.totalorder %s104, %s105
    %p116 = scmp.eq.s32.totalorder %s14, 0
    %p117 = por %p115, %p116
    %p118 = scmp.ne.s32.totalorder %s104, %s105
    %p119 = scmp.eq.s32.totalorder %s15, 3
    %p120 = por %p118, %p119
    %p122 = scmp.ne.s32.totalorder %s105, %s121
    %p123 = scmp.eq.s32.totalorder %s15, 0
    %p124 = por %p122, %p123
    %p125 = scmp.le.s32.totalorder 1, %s9
    %p126 = scmp.lt.s32.totalorder %s9, 5
    %p127 = pnand %p125, %p126
    %p128 = pneg %p127
    // Predicated region
    $region9: #{bottleneck_forward.4} parent=5 // pred_check
      _
    $region10: #{bottleneck_forward.4} parent=5 // pred_check_branch
      %130 = sbr.rel (%p127) target = $region12
    $region11: #{bottleneck_forward.4} parent=5 // pred_region
      %s131 = ssub.s32 %s9, 1
      // Predicated region
      $region13: #{bottleneck_forward.4} parent=11 // pred_check
        %p132 = pneg %p68
      $region14: #{bottleneck_forward.4} parent=11 // pred_check_branch
        %134 = sbr.rel (%p132) target = $region16
      $region15: #{bottleneck_forward.4} parent=11 // pred_region
        _
      $region16: #{bottleneck_forward.4} parent=11 // pred_fallthru
        _
      // Predicated region
      $region17: #{bottleneck_forward.4} parent=11 // pred_check
        %p135 = pneg %p89
      $region18: #{bottleneck_forward.4} parent=11 // pred_check_branch
        %137 = sbr.rel (%p135) target = $region20
      $region19: #{bottleneck_forward.4} parent=11 // pred_region
        _
      $region20: #{bottleneck_forward.4} parent=11 // pred_fallthru
        _
    $region12: #{bottleneck_forward.4} parent=5 // pred_fallthru
      _
    %p138 = scmp.lt.s32.totalorder %s9, 4
    // Predicated region
    $region21: #{bottleneck_forward.4} parent=5 // pred_check
      %p139 = pneg %p138
    $region22: #{bottleneck_forward.4} parent=5 // pred_check_branch
      %141 = sbr.rel (%p139) target = $region24
    $region23: #{bottleneck_forward.4} parent=5 // pred_region
      // Predicated region
      $region25: #{bottleneck_forward.4} parent=23 // pred_check
        %p142 = pneg %p41
      $region26: #{bottleneck_forward.4} parent=23 // pred_check_branch
        %144 = sbr.rel (%p142) target = $region28
      $region27: #{bottleneck_forward.4} parent=23 // pred_region
        %s145 = smul.u32 4, %s16
        %p146 = scmp.lt.s32.totalorder %s145, 7
        %s147 = scalar_select %p146, %s145, 7
        %s148 = smul.addr %s147, 18
        %s149 = smul.addr %s148, 4
        %s150 = scalar_lea.vmem %s0, %s149
        %s151 = smul.u32 4, %s16
      $region28: #{bottleneck_forward.4} parent=23 // pred_fallthru
        _
    $region24: #{bottleneck_forward.4} parent=5 // pred_fallthru
      _
    %p152 = scmp.le.s32.totalorder 1, %s9
    %p153 = scmp.lt.s32.totalorder %s9, 5
    %p154 = pnand %p152, %p153
    %p155 = pneg %p154
    // Predicated region
    $region29: #{bottleneck_forward.4} parent=5 // pred_check
      _
    $region30: #{bottleneck_forward.4} parent=5 // pred_check_branch
      %157 = sbr.rel (%p154) target = $region32
    $region31: #{bottleneck_forward.4} parent=5 // pred_region
      %s158 = ssub.s32 %s9, 1
      %s159 = smul.u32 4, %s18
      %p160 = scmp.lt.s32.totalorder %s159, 7
      %s161 = scalar_select %p160, %s159, 7
      %s162 = smul.addr %s161, 18
      %s163 = smul.addr %s162, 4
      %s164 = scalar_lea.vmem %s0, %s163
      %p165 = pneg %p47
      %p166 = pneg %p44
      %p167 = pneg %p68
      %p168 = pneg %p65
      %p169 = pneg %p89
      %p170 = pneg %p86
      %p171 = pneg %p117
      %p172 = pneg %p114
      %s173 = smul.u32 4, %s19
      %p174 = scmp.lt.s32.totalorder %s18, 1
      %s175 = scalar_select %p174, %s18, 1
      %p176 = scmp.lt.s32.totalorder %s173, 7
      %s177 = scalar_select %p176, %s173, 7
      %s178 = smul.addr %s175, 8
      %s179 = sadd.s32 %s177, %s178
      %s180 = smul.addr %s179, 4
      %s181 = scalar_lea.vmem %s3, %s180
      %s182 = smul.u32 4, %s18
      %p183 = scmp.lt.s32.totalorder %s182, 7
      %s184 = scalar_select %p183, %s182, 7
      %s185 = smul.addr %s184, 18
      %s186 = smul.addr %s185, 4
      %s187 = scalar_lea.vmem %s0, %s186
      %s188 = smul.u32 4, %s18
      %s189 = smul.u32 4, %s19
      %p190 = scmp.lt.s32.totalorder %s18, 1
      %s191 = scalar_select %p190, %s18, 1
      %p192 = scmp.lt.s32.totalorder %s189, 7
      %s193 = scalar_select %p192, %s189, 7
      %s194 = smul.addr %s191, 8
      %s195 = sadd.s32 %s193, %s194
      %s196 = smul.addr %s195, 4
      %s197 = scalar_lea.vmem %s3, %s196
      %s198 = smul.u32 4, %s19
      %s200 = smul.u32 %s19, 4
      %s201 = smul.u32 %s200, 2
      %s202 = smul.addr %s201, 4
      %s203 = scalar_lea.vmem %s187, %s202
      %v204 = vld [vmem:[%s203] sm:$0xf]
      %v205 = vld [vmem:[%s203 + $0x8] sm:$0xf]
      %v206 = vld [vmem:[%s203 + $0x10] sm:$0xf]
      %v207 = vld [vmem:[%s203 + $0x18] sm:$0xf]
      %vm208 = vcmask 27648
      %209 = vst.msk [vmem:[#allocation2] sm:$0xf] %vm208, %v204
      %210 = vst.msk [vmem:[#allocation2 + $0x4] sm:$0xf] %vm208, %v205
      %211 = vst.msk [vmem:[#allocation2 + $0x8] sm:$0xf] %vm208, %v206
      %212 = vst.msk [vmem:[#allocation2 + $0xc] sm:$0xf] %vm208, %v207
      %s213 = sadd.s32 %s201, 18
      %s214 = smul.addr %s213, 4
      %s215 = scalar_lea.vmem %s187, %s214
      %v216 = vld [vmem:[%s215] sm:$0xf]
      %v217 = vld [vmem:[%s215 + $0x8] sm:$0xf]
      %v218 = vld [vmem:[%s215 + $0x10] sm:$0xf]
      %v219 = vld [vmem:[%s215 + $0x18] sm:$0xf]
      %224 = vrot.lane.b32.xlu0 %v216, 4
      %v225 = vpop.permute.xlu0 %224
      %226 = vrot.lane.b32.xlu0 %v217, 4
      %v227 = vpop.permute.xlu0 %226
      %228 = vrot.lane.b32.xlu0 %v218, 4
      %v229 = vpop.permute.xlu0 %228
      %230 = vrot.lane.b32.xlu0 %v219, 4
      %v231 = vpop.permute.xlu0 %230
      %vm236 = vcmask 60448
      %237 = vst.msk [vmem:[#allocation2] sm:$0xf] %vm236, %v225
      %238 = vst.msk [vmem:[#allocation2 + $0x4] sm:$0xf] %vm236, %v227
      %239 = vst.msk [vmem:[#allocation2 + $0x8] sm:$0xf] %vm236, %v229
      %240 = vst.msk [vmem:[#allocation2 + $0xc] sm:$0xf] %vm236, %v231
      %v241 = vld [vmem:[%s203] sm:$0xf]
      %v242 = vld [vmem:[%s203 + $0x4] sm:$0x1]
      %v243 = vld [vmem:[%s203 + $0x8] sm:$0xf]
      %v244 = vld [vmem:[%s203 + $0xc] sm:$0x1]
      %v245 = vld [vmem:[%s203 + $0x10] sm:$0xf]
      %v246 = vld [vmem:[%s203 + $0x14] sm:$0x1]
      %v247 = vld [vmem:[%s203 + $0x18] sm:$0xf]
      %v248 = vld [vmem:[%s203 + $0x1c] sm:$0x1]
      %vm249 = vsmask.f32 3328
      %vm250 = vsmask.f32 7440
      %vm251 = vmor %vm249, %vm250
      %v253 = vshrl.u32 %v241, 16
      %v255 = vrot.slane %v253, 4
      %v256 = vshll.u32 %v241, 16
      %v258 = vrot.slane %v256, 5
      %v259 = vor.u32 %v255, %v258
      %v260 = vrot.slane %v259, 4
      %v262 = vshll.u32 %v242, 16
      %v264 = vrot.slane %v262, 5
      %v265 = vsel %vm251, %v260, %v264
      %v267 = vshrl.u32 %v243, 16
      %v269 = vrot.slane %v267, 4
      %v270 = vshll.u32 %v243, 16
      %v272 = vrot.slane %v270, 5
      %v273 = vor.u32 %v269, %v272
      %v274 = vrot.slane %v273, 4
      %v276 = vshll.u32 %v244, 16
      %v278 = vrot.slane %v276, 5
      %v279 = vsel %vm251, %v274, %v278
      %v281 = vshrl.u32 %v245, 16
      %v283 = vrot.slane %v281, 4
      %v284 = vshll.u32 %v245, 16
      %v286 = vrot.slane %v284, 5
      %v287 = vor.u32 %v283, %v286
      %v288 = vrot.slane %v287, 4
      %v290 = vshll.u32 %v246, 16
      %v292 = vrot.slane %v290, 5
      %v293 = vsel %vm251, %v288, %v292
      %v295 = vshrl.u32 %v247, 16
      %v297 = vrot.slane %v295, 4
      %v298 = vshll.u32 %v247, 16
      %v300 = vrot.slane %v298, 5
      %v301 = vor.u32 %v297, %v300
      %v302 = vrot.slane %v301, 4
      %v304 = vshll.u32 %v248, 16
      %v306 = vrot.slane %v304, 5
      %v307 = vsel %vm251, %v302, %v306
      %308 = vrot.lane.b32.xlu0 %v265, 8
      %v309 = vpop.permute.xlu0 %308
      %310 = vrot.lane.b32.xlu0 %v279, 8
      %v311 = vpop.permute.xlu0 %310
      %312 = vrot.lane.b32.xlu0 %v293, 8
      %v313 = vpop.permute.xlu0 %312
      %314 = vrot.lane.b32.xlu0 %v307, 8
      %v315 = vpop.permute.xlu0 %314
      %vm320 = vcmask 93248
      %321 = vst.msk [vmem:[#allocation2] sm:$0xf] %vm320, %v309
      %322 = vst.msk [vmem:[#allocation2 + $0x4] sm:$0xf] %vm320, %v311
      %323 = vst.msk [vmem:[#allocation2 + $0x8] sm:$0xf] %vm320, %v313
      %324 = vst.msk [vmem:[#allocation2 + $0xc] sm:$0xf] %vm320, %v315
      %s325 = sadd.s32 %s201, 36
      %s326 = smul.addr %s325, 4
      %s327 = scalar_lea.vmem %s187, %s326
      %v328 = vld [vmem:[%s327] sm:$0xf]
      %v329 = vld [vmem:[%s327 + $0x8] sm:$0xf]
      %v330 = vld [vmem:[%s327 + $0x10] sm:$0xf]
      %v331 = vld [vmem:[%s327 + $0x18] sm:$0xf]
      %336 = vrot.lane.b32.xlu0 %v328, 12
      %v337 = vpop.permute.xlu0 %336
      %338 = vrot.lane.b32.xlu0 %v329, 12
      %v339 = vpop.permute.xlu0 %338
      %340 = vrot.lane.b32.xlu0 %v330, 12
      %v341 = vpop.permute.xlu0 %340
      %342 = vrot.lane.b32.xlu0 %v331, 12
      %v343 = vpop.permute.xlu0 %342
      %vm348 = vcmask 126048
      %349 = vst.msk [vmem:[#allocation2] sm:$0xf] %vm348, %v337
      %350 = vst.msk [vmem:[#allocation2 + $0x4] sm:$0xf] %vm348, %v339
      %351 = vst.msk [vmem:[#allocation2 + $0x8] sm:$0xf] %vm348, %v341
      %352 = vst.msk [vmem:[#allocation2 + $0xc] sm:$0xf] %vm348, %v343
      %s353 = sadd.s32 %s201, 54
      %s354 = smul.addr %s353, 4
      %s355 = scalar_lea.vmem %s187, %s354
      %v356 = vld [vmem:[%s355] sm:$0xf]
      %v357 = vld [vmem:[%s355 + $0x8] sm:$0xf]
      %v358 = vld [vmem:[%s355 + $0x10] sm:$0xf]
      %v359 = vld [vmem:[%s355 + $0x18] sm:$0xf]
      %364 = vrot.lane.b32.xlu0 %v356, 16
      %v365 = vpop.permute.xlu0 %364
      %366 = vrot.lane.b32.xlu0 %v357, 16
      %v367 = vpop.permute.xlu0 %366
      %368 = vrot.lane.b32.xlu0 %v358, 16
      %v369 = vpop.permute.xlu0 %368
      %370 = vrot.lane.b32.xlu0 %v359, 16
      %v371 = vpop.permute.xlu0 %370
      %vm376 = vcmask 158848
      %377 = vst.msk [vmem:[#allocation2] sm:$0xf] %vm376, %v365
      %378 = vst.msk [vmem:[#allocation2 + $0x4] sm:$0xf] %vm376, %v367
      %379 = vst.msk [vmem:[#allocation2 + $0x8] sm:$0xf] %vm376, %v369
      %380 = vst.msk [vmem:[#allocation2 + $0xc] sm:$0xf] %vm376, %v371
      %v381 = vld [vmem:[%s327] sm:$0xf]
      %v382 = vld [vmem:[%s327 + $0x4] sm:$0x1]
      %v383 = vld [vmem:[%s327 + $0x8] sm:$0xf]
      %v384 = vld [vmem:[%s327 + $0xc] sm:$0x1]
      %v385 = vld [vmem:[%s327 + $0x10] sm:$0xf]
      %v386 = vld [vmem:[%s327 + $0x14] sm:$0x1]
      %v387 = vld [vmem:[%s327 + $0x18] sm:$0xf]
      %v388 = vld [vmem:[%s327 + $0x1c] sm:$0x1]
      %v390 = vshrl.u32 %v381, 16
      %v392 = vrot.slane %v390, 4
      %v393 = vshll.u32 %v381, 16
      %v395 = vrot.slane %v393, 5
      %v396 = vor.u32 %v392, %v395
      %v397 = vrot.slane %v396, 4
      %v399 = vshll.u32 %v382, 16
      %v401 = vrot.slane %v399, 5
      %v402 = vsel %vm251, %v397, %v401
      %v404 = vshrl.u32 %v383, 16
      %v406 = vrot.slane %v404, 4
      %v407 = vshll.u32 %v383, 16
      %v409 = vrot.slane %v407, 5
      %v410 = vor.u32 %v406, %v409
      %v411 = vrot.slane %v410, 4
      %v413 = vshll.u32 %v384, 16
      %v415 = vrot.slane %v413, 5
      %v416 = vsel %vm251, %v411, %v415
      %v418 = vshrl.u32 %v385, 16
      %v420 = vrot.slane %v418, 4
      %v421 = vshll.u32 %v385, 16
      %v423 = vrot.slane %v421, 5
      %v424 = vor.u32 %v420, %v423
      %v425 = vrot.slane %v424, 4
      %v427 = vshll.u32 %v386, 16
      %v429 = vrot.slane %v427, 5
      %v430 = vsel %vm251, %v425, %v429
      %v432 = vshrl.u32 %v387, 16
      %v434 = vrot.slane %v432, 4
      %v435 = vshll.u32 %v387, 16
      %v437 = vrot.slane %v435, 5
      %v438 = vor.u32 %v434, %v437
      %v439 = vrot.slane %v438, 4
      %v441 = vshll.u32 %v388, 16
      %v443 = vrot.slane %v441, 5
      %v444 = vsel %vm251, %v439, %v443
      %445 = vrot.lane.b32.xlu0 %v402, 20
      %v446 = vpop.permute.xlu0 %445
      %447 = vrot.lane.b32.xlu0 %v416, 20
      %v448 = vpop.permute.xlu0 %447
      %449 = vrot.lane.b32.xlu0 %v430, 20
      %v450 = vpop.permute.xlu0 %449
      %451 = vrot.lane.b32.xlu0 %v444, 20
      %v452 = vpop.permute.xlu0 %451
      %vm457 = vcmask 191648
      %458 = vst.msk [vmem:[#allocation2] sm:$0xf] %vm457, %v446
      %459 = vst.msk [vmem:[#allocation2 + $0x4] sm:$0xf] %vm457, %v448
      %460 = vst.msk [vmem:[#allocation2 + $0x8] sm:$0xf] %vm457, %v450
      %461 = vst.msk [vmem:[#allocation2 + $0xc] sm:$0xf] %vm457, %v452
      %s462 = sadd.s32 %s200, 1
      %s463 = smul.u32 %s462, 2
      %s464 = smul.addr %s463, 4
      %s465 = scalar_lea.vmem %s187, %s464
      %v466 = vld [vmem:[%s465] sm:$0xf]
      %v467 = vld [vmem:[%s465 + $0x8] sm:$0xf]
      %v468 = vld [vmem:[%s465 + $0x10] sm:$0xf]
      %v469 = vld [vmem:[%s465 + $0x18] sm:$0xf]
      %474 = vrot.lane.b32.xlu0 %v466, 24
      %v475 = vpop.permute.xlu0 %474
      %476 = vrot.lane.b32.xlu0 %v467, 24
      %v477 = vpop.permute.xlu0 %476
      %478 = vrot.lane.b32.xlu0 %v468, 24
      %v479 = vpop.permute.xlu0 %478
      %480 = vrot.lane.b32.xlu0 %v469, 24
      %v481 = vpop.permute.xlu0 %480
      %vm486 = vcmask 224448
      %487 = vst.msk [vmem:[#allocation2] sm:$0xf] %vm486, %v475
      %488 = vst.msk [vmem:[#allocation2 + $0x4] sm:$0xf] %vm486, %v477
      %489 = vst.msk [vmem:[#allocation2 + $0x8] sm:$0xf] %vm486, %v479
      %490 = vst.msk [vmem:[#allocation2 + $0xc] sm:$0xf] %vm486, %v481
      %s491 = sadd.s32 %s463, 18
      %s492 = smul.addr %s491, 4
      %s493 = scalar_lea.vmem %s187, %s492
      %v494 = vld [vmem:[%s493] sm:$0xf]
      %v495 = vld [vmem:[%s493 + $0x8] sm:$0xf]
      %v496 = vld [vmem:[%s493 + $0x10] sm:$0xf]
      %v497 = vld [vmem:[%s493 + $0x18] sm:$0xf]
      %502 = vrot.lane.b32.xlu0 %v494, 28
      %v503 = vpop.permute.xlu0 %502
      %504 = vrot.lane.b32.xlu0 %v495, 28
      %v505 = vpop.permute.xlu0 %504
      %506 = vrot.lane.b32.xlu0 %v496, 28
      %v507 = vpop.permute.xlu0 %506
      %508 = vrot.lane.b32.xlu0 %v497, 28
      %v509 = vpop.permute.xlu0 %508
      %vm514 = vcmask 257248
      %515 = vst.msk [vmem:[#allocation2] sm:$0xf] %vm514, %v503
      %516 = vst.msk [vmem:[#allocation2 + $0x4] sm:$0xf] %vm514, %v505
      %517 = vst.msk [vmem:[#allocation2 + $0x8] sm:$0xf] %vm514, %v507
      %518 = vst.msk [vmem:[#allocation2 + $0xc] sm:$0xf] %vm514, %v509
      %v519 = vld [vmem:[%s465] sm:$0xf]
      %v520 = vld [vmem:[%s465 + $0x4] sm:$0x1]
      %v521 = vld [vmem:[%s465 + $0x8] sm:$0xf]
      %v522 = vld [vmem:[%s465 + $0xc] sm:$0x1]
      %v523 = vld [vmem:[%s465 + $0x10] sm:$0xf]
      %v524 = vld [vmem:[%s465 + $0x14] sm:$0x1]
      %v525 = vld [vmem:[%s465 + $0x18] sm:$0xf]
      %v526 = vld [vmem:[%s465 + $0x1c] sm:$0x1]
      %v528 = vshrl.u32 %v519, 16
      %v530 = vrot.slane %v528, 4
      %v531 = vshll.u32 %v519, 16
      %v533 = vrot.slane %v531, 5
      %v534 = vor.u32 %v530, %v533
      %v535 = vrot.slane %v534, 4
      %v537 = vshll.u32 %v520, 16
      %v539 = vrot.slane %v537, 5
      %v540 = vsel %vm251, %v535, %v539
      %v542 = vshrl.u32 %v521, 16
      %v544 = vrot.slane %v542, 4
      %v545 = vshll.u32 %v521, 16
      %v547 = vrot.slane %v545, 5
      %v548 = vor.u32 %v544, %v547
      %v549 = vrot.slane %v548, 4
      %v551 = vshll.u32 %v522, 16
      %v553 = vrot.slane %v551, 5
      %v554 = vsel %vm251, %v549, %v553
      %v556 = vshrl.u32 %v523, 16
      %v558 = vrot.slane %v556, 4
      %v559 = vshll.u32 %v523, 16
      %v561 = vrot.slane %v559, 5
      %v562 = vor.u32 %v558, %v561
      %v563 = vrot.slane %v562, 4
      %v565 = vshll.u32 %v524, 16
      %v567 = vrot.slane %v565, 5
      %v568 = vsel %vm251, %v563, %v567
      %v570 = vshrl.u32 %v525, 16
      %v572 = vrot.slane %v570, 4
      %v573 = vshll.u32 %v525, 16
      %v575 = vrot.slane %v573, 5
      %v576 = vor.u32 %v572, %v575
      %v577 = vrot.slane %v576, 4
      %v579 = vshll.u32 %v526, 16
      %v581 = vrot.slane %v579, 5
      %v582 = vsel %vm251, %v577, %v581
      %583 = vrot.lane.b32.xlu0 %v540, 32
      %v584 = vpop.permute.xlu0 %583
      %585 = vrot.lane.b32.xlu0 %v554, 32
      %v586 = vpop.permute.xlu0 %585
      %587 = vrot.lane.b32.xlu0 %v568, 32
      %v588 = vpop.permute.xlu0 %587
      %589 = vrot.lane.b32.xlu0 %v582, 32
      %v590 = vpop.permute.xlu0 %589
      %vm595 = vcmask 290048
      %596 = vst.msk [vmem:[#allocation2] sm:$0xf] %vm595, %v584
      %597 = vst.msk [vmem:[#allocation2 + $0x4] sm:$0xf] %vm595, %v586
      %598 = vst.msk [vmem:[#allocation2 + $0x8] sm:$0xf] %vm595, %v588
      %599 = vst.msk [vmem:[#allocation2 + $0xc] sm:$0xf] %vm595, %v590
      %v600 = vld [vmem:[#allocation2] sm:$0xf]
      %v601 = vld [vmem:[#allocation2 + $0x4] sm:$0xf]
      %v602 = vld [vmem:[#allocation2 + $0x8] sm:$0xf]
      %v603 = vld [vmem:[#allocation2 + $0xc] sm:$0xf]
      %v604 = vld [vmem:[%s1] sm:$0xf]
      %v605 = vld [vmem:[%s1 + $0x4] sm:$0xf]
      %v606 = vld [vmem:[%s1 + $0x8] sm:$0xf]
      %v607 = vld [vmem:[%s1 + $0xc] sm:$0xf]
      %v608 = vld [vmem:[%s1 + $0x10] sm:$0x3]
      %v609 = vld [vmem:[%s2] sm:$0x1]
      %v611 = vlaneseq
      %v612 = vshrl.u32 %v611, 7
      %v613 = vsub.s32 0, %v612
      %v614 = vrot.slane %v609, %v613
      %v620 = vunpack.c.l.b16 %v600
      %v621 = vunpack.c.l.b16 %v601
      %v622 = vunpack.c.l.b16 %v602
      %v623 = vunpack.c.l.b16 %v603
      %v624 = vpack.c.b16 %v621, %v620
      %v625 = vpack.c.b16 %v623, %v622
      %v631 = vunpack.c.l.b16 %v604
      %v632 = vunpack.c.l.b16 %v605
      %v633 = vunpack.c.l.b16 %v606
      %v634 = vunpack.c.l.b16 %v607
      %v635 = vunpack.c.l.b16 %v608
      %v636 = vpack.c.b16 %v632, %v631
      %v637 = vpack.c.b16 %v634, %v633
      %v638 = vpack.c.b16 %v635, %v635
      %vm641 = vcmask 293888
      %v643 = vsel %vm641, %v624, 0
      %v646 = vsel %vm641, %v625, 0
      %vm648 = vcmask 1041408
      %v650 = vsel %vm648, %v638, 0
      %652 = vmatprep.subr.bf16.mxu0 0
      %653 = vmatpush1.bf16.msra.mxu0 %v636
      %654 = vmatprep.subr.bf16.mxu0 0
      %655 = vmatpush1.bf16.msra.mxu0 %v637
      %656 = vmatprep.subr.bf16.mxu0 0
      %657 = vmatpush1.bf16.msra.mxu0 %v650
      %658 = vmatprep.subr.bf16.mxu0 0
      %659 = vmatpush1.bf16.msra.mxu0 0
      %660 = vmatprep.subr.bf16.mxu0 0
      %661 = vmatpush1.bf16.msra.mxu0 0
      %662 = vmatprep.subr.bf16.mxu0 0
      %663 = vmatpush1.bf16.msra.mxu0 0
      %664 = vmatprep.subr.bf16.mxu0 0
      %665 = vmatpush1.bf16.msra.mxu0 0
      %666 = vmatprep.subr.bf16.mxu0 0
      %667 = vmatpush1.bf16.msra.mxu0 0
      %668 = vmatprep.subr.bf16.mxu0 0
      %669 = vmatpush1.bf16.msra.mxu0 0
      %670 = vmatprep.subr.bf16.mxu0 0
      %671 = vmatpush1.bf16.msra.mxu0 0
      %672 = vmatprep.subr.bf16.mxu0 0
      %673 = vmatpush1.bf16.msra.mxu0 0
      %674 = vmatprep.subr.bf16.mxu0 0
      %675 = vmatpush1.bf16.msra.mxu0 0
      %676 = vmatprep.subr.bf16.mxu0 0
      %677 = vmatpush1.bf16.msra.mxu0 0
      %678 = vmatprep.subr.bf16.mxu0 0
      %679 = vmatpush1.bf16.msra.mxu0 0
      %680 = vmatprep.subr.bf16.mxu0 0
      %681 = vmatpush1.bf16.msra.mxu0 0
      %682 = vmatprep.subr.bf16.mxu0 0
      %683 = vmatpush1.bf16.msra.mxu0 0
      %684 = vmatprep.mubr.bf16.mxu0 0
      %685 = vmatmul.mubr.bf16.gmra.mrb[0].mxu0 %v643
      %v686 = vpop.f32.mrb[0].mxu0
      %v687 = vadd.f32 %v614, %v686
      %v688 = vpop.f32.mrb[0].mxu0
      %v689 = vpop.f32.mrb[0].mxu0
      %v690 = vadd.f32 %v614, %v689
      %v691 = vpop.f32.mrb[0].mxu0
      %692 = vmatprep.mubr.bf16.mxu0 0
      %693 = vmatmul.mubr.bf16.gmra.mrb[0].mxu0 %v646
      %v694 = vpop.f32.mrb[0].mxu0
      %v695 = vadd.f32 %v614, %v694
      %v696 = vpop.f32.mrb[0].mxu0
      %v697 = vpop.f32.mrb[0].mxu0
      %v698 = vadd.f32 %v614, %v697
      %v699 = vpop.f32.mrb[0].mxu0
      %700 = vdwg.mxu0
      %v701 = vmax.f32 %v687, 0.0
      %v702 = vmax.f32 %v690, 0.0
      %v703 = vmax.f32 %v695, 0.0
      %v704 = vmax.f32 %v698, 0.0
      %v705 = vpack.c.bf16 %v701, %v701
      %v706 = vpack.c.bf16 %v702, %v702
      %v707 = vpack.c.bf16 %v703, %v703
      %v708 = vpack.c.bf16 %v704, %v704
      %709 = vst.msk [vmem:[%s197] sm:$0xf] %vm208, %v705
      %710 = vst.msk [vmem:[%s197 + $0x4] sm:$0xf] %vm208, %v706
      %711 = vst.msk [vmem:[%s197 + $0x8] sm:$0xf] %vm208, %v707
      %712 = vst.msk [vmem:[%s197 + $0xc] sm:$0xf] %vm208, %v708
      %s713 = smul.u32 4, %s19
      %p714 = scmp.lt.s32.totalorder %s18, 1
      %s715 = scalar_select %p714, %s18, 1
      %p716 = scmp.lt.s32.totalorder %s713, 7
      %s717 = scalar_select %p716, %s713, 7
      %s718 = smul.addr %s715, 8
      %s719 = sadd.s32 %s717, %s718
      %s720 = smul.addr %s719, 4
      %s721 = scalar_lea.vmem %s3, %s720
      // Predicated region
      $region33: #{bottleneck_forward.4} parent=31 // pred_check
        %p722 = pneg %p114
      $region34: #{bottleneck_forward.4} parent=31 // pred_check_branch
        %724 = sbr.rel (%p722) target = $region36
      $region35: #{bottleneck_forward.4} parent=31 // pred_region
        %s725 = smul.u32 4, %s19
      $region36: #{bottleneck_forward.4} parent=31 // pred_fallthru
        _
    $region32: #{bottleneck_forward.4} parent=5 // pred_fallthru
      _
    %p726 = scmp.le.s32.totalorder 2, %s9
    // Predicated region
    $region37: #{bottleneck_forward.4} parent=5 // pred_check
      %p727 = pneg %p726
    $region38: #{bottleneck_forward.4} parent=5 // pred_check_branch
      %729 = sbr.rel (%p727) target = $region40
    $region39: #{bottleneck_forward.4} parent=5 // pred_region
      %s730 = ssub.s32 %s9, 2
      // Predicated region
      $region41: #{bottleneck_forward.4} parent=39 // pred_check
        %p731 = pneg %p120
      $region42: #{bottleneck_forward.4} parent=39 // pred_check_branch
        %733 = sbr.rel (%p731) target = $region44
      $region43: #{bottleneck_forward.4} parent=39 // pred_region
        %s734 = smul.u32 4, %s21
        %p735 = scmp.lt.s32.totalorder %s20, 1
        %s736 = scalar_select %p735, %s20, 1
        %p737 = scmp.lt.s32.totalorder %s734, 7
        %s738 = scalar_select %p737, %s734, 7
        %s739 = smul.addr %s736, 8
        %s740 = sadd.s32 %s738, %s739
        %s741 = smul.addr %s740, 4
        %s742 = scalar_lea.vmem %s3, %s741
      $region44: #{bottleneck_forward.4} parent=39 // pred_fallthru
        _
    $region40: #{bottleneck_forward.4} parent=5 // pred_fallthru
      _
  $region6: #{bottleneck_forward.4} parent=0 // loop_footer
    %s13 = sadd.s32 1, %s9
  $region7: #{bottleneck_forward.4} parent=0 // loop_footer_branch
    %8 = sbr.rel target = $region3
  $region8: #{bottleneck_forward.4} parent=0 // loop_exit
    _

</llo_original>
